<compile_context>
chip_gen: v7x
topology: tpu7x:2x2x1
jax: 0.10.0
libtpu: 0.0.40
codegen_flags: <defaults>
</compile_context>

<pallas_src>
import numpy as np
import jax
import jax.numpy as jnp
from jax.experimental import pallas as pl
from jax.experimental.pallas import tpu as pltpu


# ----------------------------------------------------------------------------
# Pallas kernel: entire HGDC_C forward (matmul hot path) in VMEM.
# ----------------------------------------------------------------------------
def hgdc_kernel(a1_ref, a2_ref, x_ref,
                w1_ref, b1_ref,
                wc11_ref, wc12_ref, bc11_ref, bc12_ref,
                wc21t_ref, wc21b_ref, wc22t_ref, wc22b_ref, bc21_ref, bc22_ref,
                wc31t_ref, wc31b_ref, wc32t_ref, wc32b_ref, bc31_ref, bc32_ref,
                wr0_ref, wr1t_ref, wr1b_ref, wr2t_ref, wr2b_ref,
                wr3t_ref, wr3b_ref, bout_ref,
                out_ref):
    dotf = lambda a, b: jnp.dot(a, b, preferred_element_type=jnp.float32)
    bf16 = jnp.bfloat16

    A1 = a1_ref[...]                      # (N, N) bf16
    A2 = a2_ref[...]                      # (N, N) bf16

    # R0 = relu(linear1(x)); bf16 x bf16 -> f32 accumulate, bias/relu in f32.
    R0 = jnp.maximum(dotf(x_ref[...], w1_ref[...]) + b1_ref[...], 0.0)
    R0b = R0.astype(bf16)

    # ---- Layer 1: both branches fed by R0 (H-wide input). -------------------
    P11 = dotf(R0b, wc11_ref[...]).astype(bf16)
    P12 = dotf(R0b, wc12_ref[...]).astype(bf16)
    Ra1 = dotf(A1, P11) + bc11_ref[...]          # (N, H) f32
    Rb1 = dotf(A2, P12) + bc12_ref[...]          # (N, H) f32
    Ra1b, Rb1b = Ra1.astype(bf16), Rb1.astype(bf16)

    # ---- Layers 2/3: 2H-wide input realized as split top/bottom weights, so
    # torch.cat((Ra, Rb), 1) @ W  ==  Ra @ W_top + Rb @ W_bot (no lane concat).
    def gcn_layer(Ra_b, Rb_b, wt1, wb1, wt2, wb2, bc1, bc2):
        P1 = (dotf(Ra_b, wt1[...]) + dotf(Rb_b, wb1[...])).astype(bf16)
        P2 = (dotf(Ra_b, wt2[...]) + dotf(Rb_b, wb2[...])).astype(bf16)
        Ra = dotf(A1, P1) + bc1[...]
        Rb = dotf(A2, P2) + bc2[...]
        return Ra, Rb

    Ra2, Rb2 = gcn_layer(Ra1b, Rb1b, wc21t_ref, wc21b_ref,
                         wc22t_ref, wc22b_ref, bc21_ref, bc22_ref)
    Ra2b, Rb2b = Ra2.astype(bf16), Rb2.astype(bf16)
    Ra3, Rb3 = gcn_layer(Ra2b, Rb2b, wc31t_ref, wc31b_ref,
                         wc32t_ref, wc32b_ref, bc31_ref, bc32_ref)

    # ---- Readout: off the MXU.  wmix and the 4 biases are folded on the
    # host into per-branch weight rows + one scalar bias; a VPU elementwise
    # weighted sum followed by a single XLU lane reduction gives the output.
    elem = (R0 * wr0_ref[...]
            + Ra1 * wr1t_ref[...] + Rb1 * wr1b_ref[...]
            + Ra2 * wr2t_ref[...] + Rb2 * wr2b_ref[...]
            + Ra3 * wr3t_ref[...] + Rb3 * wr3b_ref[...])
    out_ref[...] = jnp.sum(elem, axis=1, keepdims=True) + bout_ref[...]


# ----------------------------------------------------------------------------
# Host glue: dense symmetric-normalized adjacency (GCNConv, no self loops),
# built once per graph, directly in the kernel's bf16 dtype.
# ----------------------------------------------------------------------------
def gcn_norm_dense(edge_index, num_nodes, dtype=jnp.bfloat16):
    src = edge_index[0]
    dst = edge_index[1]
    A = jnp.zeros((num_nodes, num_nodes), jnp.float32).at[dst, src].add(1.0)
    deg = jnp.sum(A, axis=1)
    dinv = jnp.where(deg > 0, jax.lax.rsqrt(deg), 0.0)
    return (A * dinv[:, None] * dinv[None, :]).astype(dtype)


# ----------------------------------------------------------------------------
# Host prep: split 2H-input weights into top/bottom halves, cast matmul
# weights to bf16, fold wmix into the readout weight rows / bias.
# ----------------------------------------------------------------------------
def fuse_params(params):
    (w1, b1, wc11, bc11, wc12, bc12, wc21, bc21, wc22, bc22,
     wc31, bc31, wc32, bc32, wr0, br0, wr1, br1, wr2, br2, wr3, br3,
     wmix) = params
    H = w1.shape[1]
    bf = jnp.bfloat16
    split = lambda w: (w[:H].astype(bf), w[H:].astype(bf))

    wc21t, wc21b = split(wc21)
    wc22t, wc22b = split(wc22)
    wc31t, wc31b = split(wc31)
    wc32t, wc32b = split(wc32)

    # Readout: wmix-scaled broadcast rows (f32 — VPU path, v5e has no bf16 VPU).
    wr0_row = (wr0 * wmix[0]).reshape(1, H)
    wr1t_row = (wr1[:H] * wmix[1]).reshape(1, H)
    wr1b_row = (wr1[H:] * wmix[1]).reshape(1, H)
    wr2t_row = (wr2[:H] * wmix[2]).reshape(1, H)
    wr2b_row = (wr2[H:] * wmix[2]).reshape(1, H)
    wr3t_row = (wr3[:H] * wmix[3]).reshape(1, H)
    wr3b_row = (wr3[H:] * wmix[3]).reshape(1, H)
    bout = br0 * wmix[0] + br1 * wmix[1] + br2 * wmix[2] + br3 * wmix[3]

    return [
        w1.astype(bf), b1,
        wc11.astype(bf), wc12.astype(bf), bc11, bc12,
        wc21t, wc21b, wc22t, wc22b, bc21, bc22,
        wc31t, wc31b, wc32t, wc32b, bc31, bc32,
        wr0_row, wr1t_row, wr1b_row, wr2t_row, wr2b_row, wr3t_row, wr3b_row,
        bout,
    ]


def _vmem_limit_bytes(args):
    """Generation-aware scoped-VMEM budget for the fully-resident design."""
    resident = sum(int(np.prod(a.shape)) * a.dtype.itemsize for a in args)
    try:
        phys = int(getattr(pltpu.get_tpu_info(), "vmem_capacity_bytes",
                           128 * 1024 * 1024))
    except Exception:
        phys = 128 * 1024 * 1024
    headroom = 12 * 1024 * 1024            # Mosaic scratch + f32 intermediates
    cap = max(phys - headroom, 16 * 1024 * 1024)
    want = max(32 * 1024 * 1024, 6 * resident)
    return int(min(want, cap))


def hgdc_c_forward(fused_params, x, a1, a2):
    n = x.shape[0]
    args = [a1, a2, x.astype(jnp.bfloat16)] + list(fused_params)

    return pl.pallas_call(
        hgdc_kernel,
        out_shape=jax.ShapeDtypeStruct((n, 1), jnp.float32),
        in_specs=[pl.BlockSpec(memory_space=pltpu.MemorySpace.VMEM)] * len(args),
        out_specs=pl.BlockSpec(memory_space=pltpu.MemorySpace.VMEM),
        compiler_params=pltpu.CompilerParams(
            vmem_limit_bytes=_vmem_limit_bytes(args)),
    )(*args)


# ----------------------------------------------------------------------------
# Deterministic parameter init (shapes from HGDC_C.__init__).
# ----------------------------------------------------------------------------
def init_params(key, in_channels, hidden):
    H = hidden
    shapes = [
        ("w1", (in_channels, H)), ("b1", (1, H)),
        ("wc11", (H, H)), ("bc11", (1, H)),
        ("wc12", (H, H)), ("bc12", (1, H)),
        ("wc21", (2 * H, H)), ("bc21", (1, H)),
        ("wc22", (2 * H, H)), ("bc22", (1, H)),
        ("wc31", (2 * H, H)), ("bc31", (1, H)),
        ("wc32", (2 * H, H)), ("bc32", (1, H)),
        ("wr0", (H, 1)), ("br0", (1, 1)),
        ("wr1", (2 * H, 1)), ("br1", (1, 1)),
        ("wr2", (2 * H, 1)), ("br2", (1, 1)),
        ("wr3", (2 * H, 1)), ("br3", (1, 1)),
    ]
    keys = jax.random.split(key, len(shapes))
    params = []
    for k, (name, shp) in zip(keys, shapes):
        if name.startswith("b"):
            params.append(jnp.zeros(shp, jnp.float32))
        else:
            fan_in = shp[0]
            params.append(jax.random.normal(k, shp, jnp.float32) / np.sqrt(fan_in))
    # weight_r0..weight_r3 from the module definition
    params.append(jnp.array([0.95, 0.9, 0.15, 0.1], jnp.float32))
    return params


# ----------------------------------------------------------------------------
# Pure-JAX reference (same math, full f32 precision) for a correctness check.
# ----------------------------------------------------------------------------
def reference_forward(params, x, edge_index_1, edge_index_2):
    (w1, b1, wc11, bc11, wc12, bc12, wc21, bc21, wc22, bc22,
     wc31, bc31, wc32, bc32, wr0, br0, wr1, br1, wr2, br2, wr3, br3,
     wmix) = params
    n = x.shape[0]
    a1 = gcn_norm_dense(edge_index_1, n, dtype=jnp.float32)
    a2 = gcn_norm_dense(edge_index_2, n, dtype=jnp.float32)
    hp = jax.lax.Precision.HIGHEST
    mm = lambda a, b: jnp.dot(a, b, precision=hp)

    R0 = jnp.maximum(mm(x, w1) + b1, 0.0)
    Rk11 = mm(a1, mm(R0, wc11)) + bc11
    Rk12 = mm(a2, mm(R0, wc12)) + bc12
    R1 = jnp.concatenate([Rk11, Rk12], axis=1)
    Rk21 = mm(a1, mm(R1, wc21)) + bc21
    Rk22 = mm(a2, mm(R1, wc22)) + bc22
    R2 = jnp.concatenate([Rk21, Rk22], axis=1)
    Rk31 = mm(a1, mm(R2, wc31)) + bc31
    Rk32 = mm(a2, mm(R2, wc32)) + bc32
    R3 = jnp.concatenate([Rk31, Rk32], axis=1)
    res0 = mm(R0, wr0) + br0
    res1 = mm(R1, wr1) + br1
    res2 = mm(R2, wr2) + br2
    res3 = mm(R3, wr3) + br3
    return res0 * wmix[0] + res1 * wmix[1] + res2 * wmix[2] + res3 * wmix[3]


if __name__ == "__main__":
    N, IN_CH, HIDDEN, N_EDGES = 64, 16, 32, 160

    key = jax.random.PRNGKey(0)
    kx, ke1, ke2, kp = jax.random.split(key, 4)

    x = jax.random.normal(kx, (N, IN_CH), jnp.float32)
    edge_index_1 = jax.random.randint(ke1, (2, N_EDGES), 0, N, jnp.int32)
    edge_index_2 = jax.random.randint(ke2, (2, N_EDGES), 0, N, jnp.int32)

    params = init_params(kp, IN_CH, HIDDEN)

    # Host-side prep, done once and cached for repeated inference:
    # dense normalized adjacencies (bf16) + split / bf16 / wmix-folded weights.
    a1 = jax.block_until_ready(gcn_norm_dense(edge_index_1, N))
    a2 = jax.block_until_ready(gcn_norm_dense(edge_index_2, N))
    fused = fuse_params(params)

    forward = jax.jit(hgdc_c_forward)
    out = jax.block_until_ready(forward(fused, x, a1, a2))

    ref = jax.block_until_ready(
        reference_forward(params, x, edge_index_1, edge_index_2))

    assert out.shape == (N, 1), out.shape
    # Tolerance accounts for the all-bf16 MXU path (weights, activations and
    # adjacency in bf16; f32 accumulation) vs. the full-f32 reference.
    np.testing.assert_allclose(np.asarray(out), np.asarray(ref),
                               rtol=6e-2, atol=6e-2)
    print("KERNEL_OK")
</pallas_src>

<mosaic_0001>
module attributes {stable_mosaic.version = 11 : i64} {
  func.func @hgdc_kernel(%arg0: memref<64x64xbf16, #tpu.memory_space<vmem>>, %arg1: memref<64x64xbf16, #tpu.memory_space<vmem>>, %arg2: memref<64x16xbf16, #tpu.memory_space<vmem>>, %arg3: memref<16x32xbf16, #tpu.memory_space<vmem>>, %arg4: memref<1x32xf32, #tpu.memory_space<vmem>>, %arg5: memref<32x32xbf16, #tpu.memory_space<vmem>>, %arg6: memref<32x32xbf16, #tpu.memory_space<vmem>>, %arg7: memref<1x32xf32, #tpu.memory_space<vmem>>, %arg8: memref<1x32xf32, #tpu.memory_space<vmem>>, %arg9: memref<32x32xbf16, #tpu.memory_space<vmem>>, %arg10: memref<32x32xbf16, #tpu.memory_space<vmem>>, %arg11: memref<32x32xbf16, #tpu.memory_space<vmem>>, %arg12: memref<32x32xbf16, #tpu.memory_space<vmem>>, %arg13: memref<1x32xf32, #tpu.memory_space<vmem>>, %arg14: memref<1x32xf32, #tpu.memory_space<vmem>>, %arg15: memref<32x32xbf16, #tpu.memory_space<vmem>>, %arg16: memref<32x32xbf16, #tpu.memory_space<vmem>>, %arg17: memref<32x32xbf16, #tpu.memory_space<vmem>>, %arg18: memref<32x32xbf16, #tpu.memory_space<vmem>>, %arg19: memref<1x32xf32, #tpu.memory_space<vmem>>, %arg20: memref<1x32xf32, #tpu.memory_space<vmem>>, %arg21: memref<1x32xf32, #tpu.memory_space<vmem>>, %arg22: memref<1x32xf32, #tpu.memory_space<vmem>>, %arg23: memref<1x32xf32, #tpu.memory_space<vmem>>, %arg24: memref<1x32xf32, #tpu.memory_space<vmem>>, %arg25: memref<1x32xf32, #tpu.memory_space<vmem>>, %arg26: memref<1x32xf32, #tpu.memory_space<vmem>>, %arg27: memref<1x32xf32, #tpu.memory_space<vmem>>, %arg28: memref<1x1xf32, #tpu.memory_space<vmem>>, %arg29: memref<64x1xf32, #tpu.memory_space<vmem>>) attributes {dimension_semantics = [], scalar_prefetch = 0 : i64, scratch_operands = 0 : i64, tpu.core_type = #tpu.core_type<tc>} {
    %c0 = arith.constant 0 : index
    %c0_0 = arith.constant 0 : index
    %0 = vector.load %arg0[%c0, %c0_0] : memref<64x64xbf16, #tpu.memory_space<vmem>>, vector<64x64xbf16>
    %c0_1 = arith.constant 0 : index
    %c0_2 = arith.constant 0 : index
    %1 = vector.load %arg1[%c0_1, %c0_2] : memref<64x64xbf16, #tpu.memory_space<vmem>>, vector<64x64xbf16>
    %c0_3 = arith.constant 0 : index
    %c0_4 = arith.constant 0 : index
    %2 = vector.load %arg2[%c0_3, %c0_4] : memref<64x16xbf16, #tpu.memory_space<vmem>>, vector<64x16xbf16>
    %c0_5 = arith.constant 0 : index
    %c0_6 = arith.constant 0 : index
    %3 = vector.load %arg3[%c0_5, %c0_6] : memref<16x32xbf16, #tpu.memory_space<vmem>>, vector<16x32xbf16>
    %cst = arith.constant dense<0.000000e+00> : vector<64x32xf32>
    %4 = tpu.matmul %2, %3, %cst {dimension_numbers = #tpu.dot_dimension_numbers<[1], [0], [0], [1], [0, 0, 1, 1], [], []>} : vector<64x16xbf16>, vector<16x32xbf16>, vector<64x32xf32> -> vector<64x32xf32>
    %c0_7 = arith.constant 0 : index
    %c0_8 = arith.constant 0 : index
    %5 = vector.load %arg4[%c0_7, %c0_8] : memref<1x32xf32, #tpu.memory_space<vmem>>, vector<1x32xf32>
    %6 = vector.broadcast %5 : vector<1x32xf32> to vector<64x32xf32>
    %7 = arith.addf %4, %6 : vector<64x32xf32>
    %cst_9 = arith.constant 0.000000e+00 : f32
    %8 = vector.broadcast %cst_9 : f32 to vector<64x32xf32>
    %9 = arith.maximumf %7, %8 : vector<64x32xf32>
    %10 = arith.truncf %9 : vector<64x32xf32> to vector<64x32xbf16>
    %c0_10 = arith.constant 0 : index
    %c0_11 = arith.constant 0 : index
    %11 = vector.load %arg5[%c0_10, %c0_11] : memref<32x32xbf16, #tpu.memory_space<vmem>>, vector<32x32xbf16>
    %cst_12 = arith.constant dense<0.000000e+00> : vector<64x32xf32>
    %12 = tpu.matmul %10, %11, %cst_12 {dimension_numbers = #tpu.dot_dimension_numbers<[1], [0], [0], [1], [0, 0, 1, 1], [], []>} : vector<64x32xbf16>, vector<32x32xbf16>, vector<64x32xf32> -> vector<64x32xf32>
    %13 = arith.truncf %12 : vector<64x32xf32> to vector<64x32xbf16>
    %c0_13 = arith.constant 0 : index
    %c0_14 = arith.constant 0 : index
    %14 = vector.load %arg6[%c0_13, %c0_14] : memref<32x32xbf16, #tpu.memory_space<vmem>>, vector<32x32xbf16>
    %cst_15 = arith.constant dense<0.000000e+00> : vector<64x32xf32>
    %15 = tpu.matmul %10, %14, %cst_15 {dimension_numbers = #tpu.dot_dimension_numbers<[1], [0], [0], [1], [0, 0, 1, 1], [], []>} : vector<64x32xbf16>, vector<32x32xbf16>, vector<64x32xf32> -> vector<64x32xf32>
    %16 = arith.truncf %15 : vector<64x32xf32> to vector<64x32xbf16>
    %cst_16 = arith.constant dense<0.000000e+00> : vector<64x32xf32>
    %17 = tpu.matmul %0, %13, %cst_16 {dimension_numbers = #tpu.dot_dimension_numbers<[1], [0], [0], [1], [0, 0, 1, 1], [], []>} : vector<64x64xbf16>, vector<64x32xbf16>, vector<64x32xf32> -> vector<64x32xf32>
    %c0_17 = arith.constant 0 : index
    %c0_18 = arith.constant 0 : index
    %18 = vector.load %arg7[%c0_17, %c0_18] : memref<1x32xf32, #tpu.memory_space<vmem>>, vector<1x32xf32>
    %19 = vector.broadcast %18 : vector<1x32xf32> to vector<64x32xf32>
    %20 = arith.addf %17, %19 : vector<64x32xf32>
    %cst_19 = arith.constant dense<0.000000e+00> : vector<64x32xf32>
    %21 = tpu.matmul %1, %16, %cst_19 {dimension_numbers = #tpu.dot_dimension_numbers<[1], [0], [0], [1], [0, 0, 1, 1], [], []>} : vector<64x64xbf16>, vector<64x32xbf16>, vector<64x32xf32> -> vector<64x32xf32>
    %c0_20 = arith.constant 0 : index
    %c0_21 = arith.constant 0 : index
    %22 = vector.load %arg8[%c0_20, %c0_21] : memref<1x32xf32, #tpu.memory_space<vmem>>, vector<1x32xf32>
    %23 = vector.broadcast %22 : vector<1x32xf32> to vector<64x32xf32>
    %24 = arith.addf %21, %23 : vector<64x32xf32>
    %25 = arith.truncf %20 : vector<64x32xf32> to vector<64x32xbf16>
    %26 = arith.truncf %24 : vector<64x32xf32> to vector<64x32xbf16>
    %c0_22 = arith.constant 0 : index
    %c0_23 = arith.constant 0 : index
    %27 = vector.load %arg9[%c0_22, %c0_23] : memref<32x32xbf16, #tpu.memory_space<vmem>>, vector<32x32xbf16>
    %cst_24 = arith.constant dense<0.000000e+00> : vector<64x32xf32>
    %28 = tpu.matmul %25, %27, %cst_24 {dimension_numbers = #tpu.dot_dimension_numbers<[1], [0], [0], [1], [0, 0, 1, 1], [], []>} : vector<64x32xbf16>, vector<32x32xbf16>, vector<64x32xf32> -> vector<64x32xf32>
    %c0_25 = arith.constant 0 : index
    %c0_26 = arith.constant 0 : index
    %29 = vector.load %arg10[%c0_25, %c0_26] : memref<32x32xbf16, #tpu.memory_space<vmem>>, vector<32x32xbf16>
    %cst_27 = arith.constant dense<0.000000e+00> : vector<64x32xf32>
    %30 = tpu.matmul %26, %29, %cst_27 {dimension_numbers = #tpu.dot_dimension_numbers<[1], [0], [0], [1], [0, 0, 1, 1], [], []>} : vector<64x32xbf16>, vector<32x32xbf16>, vector<64x32xf32> -> vector<64x32xf32>
    %31 = arith.addf %28, %30 : vector<64x32xf32>
    %32 = arith.truncf %31 : vector<64x32xf32> to vector<64x32xbf16>
    %c0_28 = arith.constant 0 : index
    %c0_29 = arith.constant 0 : index
    %33 = vector.load %arg11[%c0_28, %c0_29] : memref<32x32xbf16, #tpu.memory_space<vmem>>, vector<32x32xbf16>
    %cst_30 = arith.constant dense<0.000000e+00> : vector<64x32xf32>
    %34 = tpu.matmul %25, %33, %cst_30 {dimension_numbers = #tpu.dot_dimension_numbers<[1], [0], [0], [1], [0, 0, 1, 1], [], []>} : vector<64x32xbf16>, vector<32x32xbf16>, vector<64x32xf32> -> vector<64x32xf32>
    %c0_31 = arith.constant 0 : index
    %c0_32 = arith.constant 0 : index
    %35 = vector.load %arg12[%c0_31, %c0_32] : memref<32x32xbf16, #tpu.memory_space<vmem>>, vector<32x32xbf16>
    %cst_33 = arith.constant dense<0.000000e+00> : vector<64x32xf32>
    %36 = tpu.matmul %26, %35, %cst_33 {dimension_numbers = #tpu.dot_dimension_numbers<[1], [0], [0], [1], [0, 0, 1, 1], [], []>} : vector<64x32xbf16>, vector<32x32xbf16>, vector<64x32xf32> -> vector<64x32xf32>
    %37 = arith.addf %34, %36 : vector<64x32xf32>
    %38 = arith.truncf %37 : vector<64x32xf32> to vector<64x32xbf16>
    %cst_34 = arith.constant dense<0.000000e+00> : vector<64x32xf32>
    %39 = tpu.matmul %0, %32, %cst_34 {dimension_numbers = #tpu.dot_dimension_numbers<[1], [0], [0], [1], [0, 0, 1, 1], [], []>} : vector<64x64xbf16>, vector<64x32xbf16>, vector<64x32xf32> -> vector<64x32xf32>
    %c0_35 = arith.constant 0 : index
    %c0_36 = arith.constant 0 : index
    %40 = vector.load %arg13[%c0_35, %c0_36] : memref<1x32xf32, #tpu.memory_space<vmem>>, vector<1x32xf32>
    %41 = vector.broadcast %40 : vector<1x32xf32> to vector<64x32xf32>
    %42 = arith.addf %39, %41 : vector<64x32xf32>
    %cst_37 = arith.constant dense<0.000000e+00> : vector<64x32xf32>
    %43 = tpu.matmul %1, %38, %cst_37 {dimension_numbers = #tpu.dot_dimension_numbers<[1], [0], [0], [1], [0, 0, 1, 1], [], []>} : vector<64x64xbf16>, vector<64x32xbf16>, vector<64x32xf32> -> vector<64x32xf32>
    %c0_38 = arith.constant 0 : index
    %c0_39 = arith.constant 0 : index
    %44 = vector.load %arg14[%c0_38, %c0_39] : memref<1x32xf32, #tpu.memory_space<vmem>>, vector<1x32xf32>
    %45 = vector.broadcast %44 : vector<1x32xf32> to vector<64x32xf32>
    %46 = arith.addf %43, %45 : vector<64x32xf32>
    %47 = arith.truncf %42 : vector<64x32xf32> to vector<64x32xbf16>
    %48 = arith.truncf %46 : vector<64x32xf32> to vector<64x32xbf16>
    %c0_40 = arith.constant 0 : index
    %c0_41 = arith.constant 0 : index
    %49 = vector.load %arg15[%c0_40, %c0_41] : memref<32x32xbf16, #tpu.memory_space<vmem>>, vector<32x32xbf16>
    %cst_42 = arith.constant dense<0.000000e+00> : vector<64x32xf32>
    %50 = tpu.matmul %47, %49, %cst_42 {dimension_numbers = #tpu.dot_dimension_numbers<[1], [0], [0], [1], [0, 0, 1, 1], [], []>} : vector<64x32xbf16>, vector<32x32xbf16>, vector<64x32xf32> -> vector<64x32xf32>
    %c0_43 = arith.constant 0 : index
    %c0_44 = arith.constant 0 : index
    %51 = vector.load %arg16[%c0_43, %c0_44] : memref<32x32xbf16, #tpu.memory_space<vmem>>, vector<32x32xbf16>
    %cst_45 = arith.constant dense<0.000000e+00> : vector<64x32xf32>
    %52 = tpu.matmul %48, %51, %cst_45 {dimension_numbers = #tpu.dot_dimension_numbers<[1], [0], [0], [1], [0, 0, 1, 1], [], []>} : vector<64x32xbf16>, vector<32x32xbf16>, vector<64x32xf32> -> vector<64x32xf32>
    %53 = arith.addf %50, %52 : vector<64x32xf32>
    %54 = arith.truncf %53 : vector<64x32xf32> to vector<64x32xbf16>
    %c0_46 = arith.constant 0 : index
    %c0_47 = arith.constant 0 : index
    %55 = vector.load %arg17[%c0_46, %c0_47] : memref<32x32xbf16, #tpu.memory_space<vmem>>, vector<32x32xbf16>
    %cst_48 = arith.constant dense<0.000000e+00> : vector<64x32xf32>
    %56 = tpu.matmul %47, %55, %cst_48 {dimension_numbers = #tpu.dot_dimension_numbers<[1], [0], [0], [1], [0, 0, 1, 1], [], []>} : vector<64x32xbf16>, vector<32x32xbf16>, vector<64x32xf32> -> vector<64x32xf32>
    %c0_49 = arith.constant 0 : index
    %c0_50 = arith.constant 0 : index
    %57 = vector.load %arg18[%c0_49, %c0_50] : memref<32x32xbf16, #tpu.memory_space<vmem>>, vector<32x32xbf16>
    %cst_51 = arith.constant dense<0.000000e+00> : vector<64x32xf32>
    %58 = tpu.matmul %48, %57, %cst_51 {dimension_numbers = #tpu.dot_dimension_numbers<[1], [0], [0], [1], [0, 0, 1, 1], [], []>} : vector<64x32xbf16>, vector<32x32xbf16>, vector<64x32xf32> -> vector<64x32xf32>
    %59 = arith.addf %56, %58 : vector<64x32xf32>
    %60 = arith.truncf %59 : vector<64x32xf32> to vector<64x32xbf16>
    %cst_52 = arith.constant dense<0.000000e+00> : vector<64x32xf32>
    %61 = tpu.matmul %0, %54, %cst_52 {dimension_numbers = #tpu.dot_dimension_numbers<[1], [0], [0], [1], [0, 0, 1, 1], [], []>} : vector<64x64xbf16>, vector<64x32xbf16>, vector<64x32xf32> -> vector<64x32xf32>
    %c0_53 = arith.constant 0 : index
    %c0_54 = arith.constant 0 : index
    %62 = vector.load %arg19[%c0_53, %c0_54] : memref<1x32xf32, #tpu.memory_space<vmem>>, vector<1x32xf32>
    %63 = vector.broadcast %62 : vector<1x32xf32> to vector<64x32xf32>
    %64 = arith.addf %61, %63 : vector<64x32xf32>
    %cst_55 = arith.constant dense<0.000000e+00> : vector<64x32xf32>
    %65 = tpu.matmul %1, %60, %cst_55 {dimension_numbers = #tpu.dot_dimension_numbers<[1], [0], [0], [1], [0, 0, 1, 1], [], []>} : vector<64x64xbf16>, vector<64x32xbf16>, vector<64x32xf32> -> vector<64x32xf32>
    %c0_56 = arith.constant 0 : index
    %c0_57 = arith.constant 0 : index
    %66 = vector.load %arg20[%c0_56, %c0_57] : memref<1x32xf32, #tpu.memory_space<vmem>>, vector<1x32xf32>
    %67 = vector.broadcast %66 : vector<1x32xf32> to vector<64x32xf32>
    %68 = arith.addf %65, %67 : vector<64x32xf32>
    %c0_58 = arith.constant 0 : index
    %c0_59 = arith.constant 0 : index
    %69 = vector.load %arg21[%c0_58, %c0_59] : memref<1x32xf32, #tpu.memory_space<vmem>>, vector<1x32xf32>
    %70 = vector.broadcast %69 : vector<1x32xf32> to vector<64x32xf32>
    %71 = arith.mulf %9, %70 : vector<64x32xf32>
    %c0_60 = arith.constant 0 : index
    %c0_61 = arith.constant 0 : index
    %72 = vector.load %arg22[%c0_60, %c0_61] : memref<1x32xf32, #tpu.memory_space<vmem>>, vector<1x32xf32>
    %73 = vector.broadcast %72 : vector<1x32xf32> to vector<64x32xf32>
    %74 = arith.mulf %20, %73 : vector<64x32xf32>
    %75 = arith.addf %71, %74 : vector<64x32xf32>
    %c0_62 = arith.constant 0 : index
    %c0_63 = arith.constant 0 : index
    %76 = vector.load %arg23[%c0_62, %c0_63] : memref<1x32xf32, #tpu.memory_space<vmem>>, vector<1x32xf32>
    %77 = vector.broadcast %76 : vector<1x32xf32> to vector<64x32xf32>
    %78 = arith.mulf %24, %77 : vector<64x32xf32>
    %79 = arith.addf %75, %78 : vector<64x32xf32>
    %c0_64 = arith.constant 0 : index
    %c0_65 = arith.constant 0 : index
    %80 = vector.load %arg24[%c0_64, %c0_65] : memref<1x32xf32, #tpu.memory_space<vmem>>, vector<1x32xf32>
    %81 = vector.broadcast %80 : vector<1x32xf32> to vector<64x32xf32>
    %82 = arith.mulf %42, %81 : vector<64x32xf32>
    %83 = arith.addf %79, %82 : vector<64x32xf32>
    %c0_66 = arith.constant 0 : index
    %c0_67 = arith.constant 0 : index
    %84 = vector.load %arg25[%c0_66, %c0_67] : memref<1x32xf32, #tpu.memory_space<vmem>>, vector<1x32xf32>
    %85 = vector.broadcast %84 : vector<1x32xf32> to vector<64x32xf32>
    %86 = arith.mulf %46, %85 : vector<64x32xf32>
    %87 = arith.addf %83, %86 : vector<64x32xf32>
    %c0_68 = arith.constant 0 : index
    %c0_69 = arith.constant 0 : index
    %88 = vector.load %arg26[%c0_68, %c0_69] : memref<1x32xf32, #tpu.memory_space<vmem>>, vector<1x32xf32>
    %89 = vector.broadcast %88 : vector<1x32xf32> to vector<64x32xf32>
    %90 = arith.mulf %64, %89 : vector<64x32xf32>
    %91 = arith.addf %87, %90 : vector<64x32xf32>
    %c0_70 = arith.constant 0 : index
    %c0_71 = arith.constant 0 : index
    %92 = vector.load %arg27[%c0_70, %c0_71] : memref<1x32xf32, #tpu.memory_space<vmem>>, vector<1x32xf32>
    %93 = vector.broadcast %92 : vector<1x32xf32> to vector<64x32xf32>
    %94 = arith.mulf %68, %93 : vector<64x32xf32>
    %95 = arith.addf %91, %94 : vector<64x32xf32>
    %cst_72 = arith.constant dense<0.000000e+00> : vector<64xf32>
    %96 = vector.multi_reduction <add>, %95, %cst_72 [1] : vector<64x32xf32> to vector<64xf32>
    %97 = vector.shape_cast %96 : vector<64xf32> to vector<64x1xf32>
    %c0_73 = arith.constant 0 : index
    %c0_74 = arith.constant 0 : index
    %98 = vector.load %arg28[%c0_73, %c0_74] : memref<1x1xf32, #tpu.memory_space<vmem>>, vector<1x1xf32>
    %99 = vector.broadcast %98 : vector<1x1xf32> to vector<64x1xf32>
    %100 = arith.addf %97, %99 : vector<64x1xf32>
    %c0_75 = arith.constant 0 : index
    %c0_76 = arith.constant 0 : index
    %101 = vector.load %arg29[%c0_75, %c0_76] : memref<64x1xf32, #tpu.memory_space<vmem>>, vector<64x1xf32>
    tpu.vector_store %arg29[%c0_75, %c0_76], %100 {strides = array<i32>} : memref<64x1xf32, #tpu.memory_space<vmem>>, vector<64x1xf32>,
    return
  }
}

</mosaic_0001>

<llo_original>
// kernel: hgdc_c_forward.1
$region0: #{hgdc_c_forward.1}
  #allocation0 [shape = 'u32[]', space=smem, size = 0x4, offset = 0x4, fixed_abs, tag = 'smem constant byte address 0x4 - core index']
  #allocation1 [shape = 'u32[144,128]{1,0:T(1,128)}', space=vmem, size = 0x12000, scoped, tag = 'internal scratch']
  #allocation2 [shape = 'f32[1,1]{1,0:T(1,128)S(1)}', space=vmem, size = 0x200, scoped, tag = 'scoped memory for hgdc_c_forward.1']
  %s0 = inlined_call_operand.smem [shape: u32[30], index: -1, kind: input, shape index: {}]
  %s1 = sld [smem:[%s0]]
  %s2 = scalar_lea.smem %s0, 1
  %s3 = sld [smem:[%s2]]
  %s4 = scalar_lea.smem %s0, 2
  %s5 = sld [smem:[%s4]]
  %s6 = scalar_lea.smem %s0, 3
  %s7 = sld [smem:[%s6]]
  %s8 = scalar_lea.smem %s0, 4
  %s9 = sld [smem:[%s8]]
  %s10 = scalar_lea.smem %s0, 5
  %s11 = sld [smem:[%s10]]
  %s12 = scalar_lea.smem %s0, 6
  %s13 = sld [smem:[%s12]]
  %s14 = scalar_lea.smem %s0, 7
  %s15 = sld [smem:[%s14]]
  %s16 = scalar_lea.smem %s0, 8
  %s17 = sld [smem:[%s16]]
  %s18 = scalar_lea.smem %s0, 9
  %s19 = sld [smem:[%s18]]
  %s20 = scalar_lea.smem %s0, 10
  %s21 = sld [smem:[%s20]]
  %s22 = scalar_lea.smem %s0, 11
  %s23 = sld [smem:[%s22]]
  %s24 = scalar_lea.smem %s0, 12
  %s25 = sld [smem:[%s24]]
  %s26 = scalar_lea.smem %s0, 13
  %s27 = sld [smem:[%s26]]
  %s28 = scalar_lea.smem %s0, 14
  %s29 = sld [smem:[%s28]]
  %s30 = scalar_lea.smem %s0, 15
  %s31 = sld [smem:[%s30]]
  %s32 = scalar_lea.smem %s0, 16
  %s33 = sld [smem:[%s32]]
  %s34 = scalar_lea.smem %s0, 17
  %s35 = sld [smem:[%s34]]
  %s36 = scalar_lea.smem %s0, 18
  %s37 = sld [smem:[%s36]]
  %s38 = scalar_lea.smem %s0, 19
  %s39 = sld [smem:[%s38]]
  %s40 = scalar_lea.smem %s0, 20
  %s41 = sld [smem:[%s40]]
  %s42 = scalar_lea.smem %s0, 21
  %s43 = sld [smem:[%s42]]
  %s44 = scalar_lea.smem %s0, 22
  %s45 = sld [smem:[%s44]]
  %s46 = scalar_lea.smem %s0, 23
  %s47 = sld [smem:[%s46]]
  %s48 = scalar_lea.smem %s0, 24
  %s49 = sld [smem:[%s48]]
  %s50 = scalar_lea.smem %s0, 25
  %s51 = sld [smem:[%s50]]
  %s52 = scalar_lea.smem %s0, 26
  %s53 = sld [smem:[%s52]]
  %s54 = scalar_lea.smem %s0, 27
  %s55 = sld [smem:[%s54]]
  %s56 = scalar_lea.smem %s0, 28
  %s57 = sld [smem:[%s56]]
  %s58 = scalar_lea.smem %s0, 29
  %s59 = sld [smem:[%s58]]
  %s60 = sld [smem:[#allocation0]]
  $region182: #{hgdc_c_forward.1} parent=0
    _
  %s62 = ssub.s32 1, %s60
  %s63 = scalar_select 0, %s62, %s60
  %v64 = vstv %s57
  %65 = vst [vmem:[#allocation2] sm:$0x1] %v64
  $region1: #{hgdc_c_forward.1} parent=0
    #allocation3 [shape = 'u8[4096]{0}', space=vmem, size = 0x1000, scoped, tag = 'input window, operand 3, single buffered']
    #allocation4 [shape = 's32[1]{0}', space=sflag, size = 0x4, scoped, tag = 'scoped memory for hgdc_c_forward.1']
    #allocation5 [shape = 'u8[512]{0}', space=vmem, size = 0x400, scoped, tag = 'input window, operand 4, single buffered']
    #allocation6 [shape = 's32[1]{0}', space=sflag, size = 0x4, scoped, tag = 'scoped memory for hgdc_c_forward.1']
    #allocation7 [shape = 'u8[8192]{0}', space=vmem, size = 0x2000, scoped, tag = 'input window, operand 5, single buffered']
    #allocation8 [shape = 'u8[8192]{0}', space=vmem, size = 0x2000, scoped, tag = 'input window, operand 6, single buffered']
    #allocation9 [shape = 's32[1]{0}', space=sflag, size = 0x4, scoped, tag = 'scoped memory for hgdc_c_forward.1']
    #allocation10 [shape = 'u8[512]{0}', space=vmem, size = 0x400, scoped, tag = 'input window, operand 7, single buffered']
    #allocation11 [shape = 'u8[512]{0}', space=vmem, size = 0x400, scoped, tag = 'input window, operand 8, single buffered']
    #allocation12 [shape = 's32[1]{0}', space=sflag, size = 0x4, scoped, tag = 'scoped memory for hgdc_c_forward.1']
    #allocation13 [shape = 'u8[8192]{0}', space=vmem, size = 0x2000, scoped, tag = 'input window, operand 10, single buffered']
    #allocation14 [shape = 'u8[8192]{0}', space=vmem, size = 0x2000, scoped, tag = 'input window, operand 12, single buffered']
    #allocation15 [shape = 's32[1]{0}', space=sflag, size = 0x4, scoped, tag = 'scoped memory for hgdc_c_forward.1']
    #allocation16 [shape = 'u8[512]{0}', space=vmem, size = 0x400, scoped, tag = 'input window, operand 13, single buffered']
    #allocation17 [shape = 'u8[512]{0}', space=vmem, size = 0x400, scoped, tag = 'input window, operand 14, single buffered']
    #allocation18 [shape = 's32[1]{0}', space=sflag, size = 0x4, scoped, tag = 'scoped memory for hgdc_c_forward.1']
    #allocation19 [shape = 'u8[8192]{0}', space=vmem, size = 0x2000, scoped, tag = 'input window, operand 16, single buffered']
    #allocation20 [shape = 'u8[8192]{0}', space=vmem, size = 0x2000, scoped, tag = 'input window, operand 17, single buffered']
    #allocation21 [shape = 's32[1]{0}', space=sflag, size = 0x4, scoped, tag = 'scoped memory for hgdc_c_forward.1']
    #allocation22 [shape = 'u8[8192]{0}', space=vmem, size = 0x2000, scoped, tag = 'input window, operand 18, single buffered']
    #allocation23 [shape = 'u8[512]{0}', space=vmem, size = 0x400, scoped, tag = 'input window, operand 19, single buffered']
    #allocation24 [shape = 's32[1]{0}', space=sflag, size = 0x4, scoped, tag = 'scoped memory for hgdc_c_forward.1']
    %66 = vsyncpa [#allocation4], 0
    %67 = vsyncpa [#allocation6], 0
    %68 = vsyncpa [#allocation9], 0
    %69 = vsyncpa [#allocation12], 0
    %70 = vsyncpa [#allocation15], 0
    %71 = vsyncpa [#allocation18], 0
    %72 = vsyncpa [#allocation21], 0
    %73 = vsyncpa [#allocation24], 0
    // Predicated region
    $region2: #{hgdc_c_forward.1} parent=1 // pred_check
      _
    $region3: #{hgdc_c_forward.1} parent=1 // pred_check_branch
      %75 = sbr.rel (0) target = $region5
    $region4: #{hgdc_c_forward.1} parent=1 // pred_region
      _
    $region5: #{hgdc_c_forward.1} parent=1 // pred_fallthru
      _
    // Predicated region
    $region6: #{hgdc_c_forward.1} parent=1 // pred_check
      _
    $region7: #{hgdc_c_forward.1} parent=1 // pred_check_branch
      %77 = sbr.rel (0) target = $region9
    $region8: #{hgdc_c_forward.1} parent=1 // pred_region
      _
    $region9: #{hgdc_c_forward.1} parent=1 // pred_fallthru
      _
    // Predicated region
    $region10: #{hgdc_c_forward.1} parent=1 // pred_check
      _
    $region11: #{hgdc_c_forward.1} parent=1 // pred_check_branch
      %79 = sbr.rel (0) target = $region13
    $region12: #{hgdc_c_forward.1} parent=1 // pred_region
      _
    $region13: #{hgdc_c_forward.1} parent=1 // pred_fallthru
      _
    // Predicated region
    $region14: #{hgdc_c_forward.1} parent=1 // pred_check
      _
    $region15: #{hgdc_c_forward.1} parent=1 // pred_check_branch
      %81 = sbr.rel (0) target = $region17
    $region16: #{hgdc_c_forward.1} parent=1 // pred_region
      %s83 = ssub.s32 128, 128
      %84 = vsyncadd [#allocation4], %s83
      %s85 = sshll.u32 [#allocation3], 4
      %s86 = int_to_ptr.vmem [resolvable:$true] %s85
      %91 = dma.hbm_to_vmem [thread:$0]  %s7, 128, %s86, [#allocation4], 64, 64, 4
    $region17: #{hgdc_c_forward.1} parent=1 // pred_fallthru
      _
    // Predicated region
    $region18: #{hgdc_c_forward.1} parent=1 // pred_check
      _
    $region19: #{hgdc_c_forward.1} parent=1 // pred_check_branch
      %93 = sbr.rel (0) target = $region21
    $region20: #{hgdc_c_forward.1} parent=1 // pred_region
      %s95 = ssub.s32 16, 16
      %96 = vsyncadd [#allocation6], %s95
      %s98 = sshll.u32 [#allocation5], 4
      %s99 = int_to_ptr.vmem [resolvable:$true] %s98
      %101 = dma.hbm_to_vmem [thread:$0]  %s9, 16, %s99, [#allocation6]
    $region21: #{hgdc_c_forward.1} parent=1 // pred_fallthru
      _
    // Predicated region
    $region22: #{hgdc_c_forward.1} parent=1 // pred_check
      _
    $region23: #{hgdc_c_forward.1} parent=1 // pred_check_branch
      %103 = sbr.rel (0) target = $region25
    $region24: #{hgdc_c_forward.1} parent=1 // pred_region
      %s105 = ssub.s32 256, 256
      %106 = vsyncadd [#allocation6], %s105
      %s107 = sshll.u32 [#allocation7], 4
      %s108 = int_to_ptr.vmem [resolvable:$true] %s107
      %113 = dma.hbm_to_vmem [thread:$0]  %s11, 256, %s108, [#allocation6], 64, 64, 4
    $region25: #{hgdc_c_forward.1} parent=1 // pred_fallthru
      _
    // Predicated region
    $region26: #{hgdc_c_forward.1} parent=1 // pred_check
      _
    $region27: #{hgdc_c_forward.1} parent=1 // pred_check_branch
      %115 = sbr.rel (0) target = $region29
    $region28: #{hgdc_c_forward.1} parent=1 // pred_region
      %s117 = ssub.s32 256, 256
      %118 = vsyncadd [#allocation9], %s117
      %s119 = sshll.u32 [#allocation8], 4
      %s120 = int_to_ptr.vmem [resolvable:$true] %s119
      %125 = dma.hbm_to_vmem [thread:$0]  %s13, 256, %s120, [#allocation9], 64, 64, 4
    $region29: #{hgdc_c_forward.1} parent=1 // pred_fallthru
      _
    // Predicated region
    $region30: #{hgdc_c_forward.1} parent=1 // pred_check
      _
    $region31: #{hgdc_c_forward.1} parent=1 // pred_check_branch
      %127 = sbr.rel (0) target = $region33
    $region32: #{hgdc_c_forward.1} parent=1 // pred_region
      %s129 = ssub.s32 16, 16
      %130 = vsyncadd [#allocation9], %s129
      %s132 = sshll.u32 [#allocation10], 4
      %s133 = int_to_ptr.vmem [resolvable:$true] %s132
      %135 = dma.hbm_to_vmem [thread:$0]  %s15, 16, %s133, [#allocation9]
    $region33: #{hgdc_c_forward.1} parent=1 // pred_fallthru
      _
    // Predicated region
    $region34: #{hgdc_c_forward.1} parent=1 // pred_check
      _
    $region35: #{hgdc_c_forward.1} parent=1 // pred_check_branch
      %137 = sbr.rel (0) target = $region37
    $region36: #{hgdc_c_forward.1} parent=1 // pred_region
      %s139 = ssub.s32 16, 16
      %140 = vsyncadd [#allocation12], %s139
      %s142 = sshll.u32 [#allocation11], 4
      %s143 = int_to_ptr.vmem [resolvable:$true] %s142
      %145 = dma.hbm_to_vmem [thread:$0]  %s17, 16, %s143, [#allocation12]
    $region37: #{hgdc_c_forward.1} parent=1 // pred_fallthru
      _
    // Predicated region
    $region38: #{hgdc_c_forward.1} parent=1 // pred_check
      _
    $region39: #{hgdc_c_forward.1} parent=1 // pred_check_branch
      %147 = sbr.rel (0) target = $region41
    $region40: #{hgdc_c_forward.1} parent=1 // pred_region
      _
    $region41: #{hgdc_c_forward.1} parent=1 // pred_fallthru
      _
    // Predicated region
    $region42: #{hgdc_c_forward.1} parent=1 // pred_check
      _
    $region43: #{hgdc_c_forward.1} parent=1 // pred_check_branch
      %149 = sbr.rel (0) target = $region45
    $region44: #{hgdc_c_forward.1} parent=1 // pred_region
      %s151 = ssub.s32 256, 256
      %152 = vsyncadd [#allocation12], %s151
      %s153 = sshll.u32 [#allocation13], 4
      %s154 = int_to_ptr.vmem [resolvable:$true] %s153
      %159 = dma.hbm_to_vmem [thread:$0]  %s21, 256, %s154, [#allocation12], 64, 64, 4
    $region45: #{hgdc_c_forward.1} parent=1 // pred_fallthru
      _
    // Predicated region
    $region46: #{hgdc_c_forward.1} parent=1 // pred_check
      _
    $region47: #{hgdc_c_forward.1} parent=1 // pred_check_branch
      %161 = sbr.rel (0) target = $region49
    $region48: #{hgdc_c_forward.1} parent=1 // pred_region
      _
    $region49: #{hgdc_c_forward.1} parent=1 // pred_fallthru
      _
    // Predicated region
    $region50: #{hgdc_c_forward.1} parent=1 // pred_check
      _
    $region51: #{hgdc_c_forward.1} parent=1 // pred_check_branch
      %163 = sbr.rel (0) target = $region53
    $region52: #{hgdc_c_forward.1} parent=1 // pred_region
      %s165 = ssub.s32 256, 256
      %166 = vsyncadd [#allocation15], %s165
      %s167 = sshll.u32 [#allocation14], 4
      %s168 = int_to_ptr.vmem [resolvable:$true] %s167
      %173 = dma.hbm_to_vmem [thread:$0]  %s25, 256, %s168, [#allocation15], 64, 64, 4
    $region53: #{hgdc_c_forward.1} parent=1 // pred_fallthru
      _
    // Predicated region
    $region54: #{hgdc_c_forward.1} parent=1 // pred_check
      _
    $region55: #{hgdc_c_forward.1} parent=1 // pred_check_branch
      %175 = sbr.rel (0) target = $region57
    $region56: #{hgdc_c_forward.1} parent=1 // pred_region
      %s177 = ssub.s32 16, 16
      %178 = vsyncadd [#allocation15], %s177
      %s180 = sshll.u32 [#allocation16], 4
      %s181 = int_to_ptr.vmem [resolvable:$true] %s180
      %183 = dma.hbm_to_vmem [thread:$0]  %s27, 16, %s181, [#allocation15]
    $region57: #{hgdc_c_forward.1} parent=1 // pred_fallthru
      _
    // Predicated region
    $region58: #{hgdc_c_forward.1} parent=1 // pred_check
      _
    $region59: #{hgdc_c_forward.1} parent=1 // pred_check_branch
      %185 = sbr.rel (0) target = $region61
    $region60: #{hgdc_c_forward.1} parent=1 // pred_region
      %s187 = ssub.s32 16, 16
      %188 = vsyncadd [#allocation18], %s187
      %s190 = sshll.u32 [#allocation17], 4
      %s191 = int_to_ptr.vmem [resolvable:$true] %s190
      %193 = dma.hbm_to_vmem [thread:$0]  %s29, 16, %s191, [#allocation18]
    $region61: #{hgdc_c_forward.1} parent=1 // pred_fallthru
      _
    // Predicated region
    $region62: #{hgdc_c_forward.1} parent=1 // pred_check
      _
    $region63: #{hgdc_c_forward.1} parent=1 // pred_check_branch
      %195 = sbr.rel (0) target = $region65
    $region64: #{hgdc_c_forward.1} parent=1 // pred_region
      _
    $region65: #{hgdc_c_forward.1} parent=1 // pred_fallthru
      _
    // Predicated region
    $region66: #{hgdc_c_forward.1} parent=1 // pred_check
      _
    $region67: #{hgdc_c_forward.1} parent=1 // pred_check_branch
      %197 = sbr.rel (0) target = $region69
    $region68: #{hgdc_c_forward.1} parent=1 // pred_region
      %s199 = ssub.s32 256, 256
      %200 = vsyncadd [#allocation18], %s199
      %s201 = sshll.u32 [#allocation19], 4
      %s202 = int_to_ptr.vmem [resolvable:$true] %s201
      %207 = dma.hbm_to_vmem [thread:$0]  %s33, 256, %s202, [#allocation18], 64, 64, 4
    $region69: #{hgdc_c_forward.1} parent=1 // pred_fallthru
      _
    // Predicated region
    $region70: #{hgdc_c_forward.1} parent=1 // pred_check
      _
    $region71: #{hgdc_c_forward.1} parent=1 // pred_check_branch
      %209 = sbr.rel (0) target = $region73
    $region72: #{hgdc_c_forward.1} parent=1 // pred_region
      %s211 = ssub.s32 256, 256
      %212 = vsyncadd [#allocation21], %s211
      %s213 = sshll.u32 [#allocation20], 4
      %s214 = int_to_ptr.vmem [resolvable:$true] %s213
      %219 = dma.hbm_to_vmem [thread:$0]  %s35, 256, %s214, [#allocation21], 64, 64, 4
    $region73: #{hgdc_c_forward.1} parent=1 // pred_fallthru
      _
    // Predicated region
    $region74: #{hgdc_c_forward.1} parent=1 // pred_check
      _
    $region75: #{hgdc_c_forward.1} parent=1 // pred_check_branch
      %221 = sbr.rel (0) target = $region77
    $region76: #{hgdc_c_forward.1} parent=1 // pred_region
      %s223 = ssub.s32 256, 256
      %224 = vsyncadd [#allocation21], %s223
      %s225 = sshll.u32 [#allocation22], 4
      %s226 = int_to_ptr.vmem [resolvable:$true] %s225
      %231 = dma.hbm_to_vmem [thread:$0]  %s37, 256, %s226, [#allocation21], 64, 64, 4
    $region77: #{hgdc_c_forward.1} parent=1 // pred_fallthru
      _
    // Predicated region
    $region78: #{hgdc_c_forward.1} parent=1 // pred_check
      _
    $region79: #{hgdc_c_forward.1} parent=1 // pred_check_branch
      %233 = sbr.rel (0) target = $region81
    $region80: #{hgdc_c_forward.1} parent=1 // pred_region
      %s235 = ssub.s32 16, 16
      %236 = vsyncadd [#allocation24], %s235
      %s238 = sshll.u32 [#allocation23], 4
      %s239 = int_to_ptr.vmem [resolvable:$true] %s238
      %241 = dma.hbm_to_vmem [thread:$0]  %s39, 16, %s239, [#allocation24]
    $region81: #{hgdc_c_forward.1} parent=1 // pred_fallthru
      _
    // Predicated region
    $region82: #{hgdc_c_forward.1} parent=1 // pred_check
      _
    $region83: #{hgdc_c_forward.1} parent=1 // pred_check_branch
      %243 = sbr.rel (0) target = $region85
    $region84: #{hgdc_c_forward.1} parent=1 // pred_region
      _
    $region85: #{hgdc_c_forward.1} parent=1 // pred_fallthru
      _
    // Predicated region
    $region86: #{hgdc_c_forward.1} parent=1 // pred_check
      _
    $region87: #{hgdc_c_forward.1} parent=1 // pred_check_branch
      %245 = sbr.rel (0) target = $region89
    $region88: #{hgdc_c_forward.1} parent=1 // pred_region
      _
    $region89: #{hgdc_c_forward.1} parent=1 // pred_fallthru
      _
    // Predicated region
    $region90: #{hgdc_c_forward.1} parent=1 // pred_check
      _
    $region91: #{hgdc_c_forward.1} parent=1 // pred_check_branch
      %247 = sbr.rel (0) target = $region93
    $region92: #{hgdc_c_forward.1} parent=1 // pred_region
      _
    $region93: #{hgdc_c_forward.1} parent=1 // pred_fallthru
      _
    // Predicated region
    $region94: #{hgdc_c_forward.1} parent=1 // pred_check
      _
    $region95: #{hgdc_c_forward.1} parent=1 // pred_check_branch
      %249 = sbr.rel (0) target = $region97
    $region96: #{hgdc_c_forward.1} parent=1 // pred_region
      _
    $region97: #{hgdc_c_forward.1} parent=1 // pred_fallthru
      _
    // Predicated region
    $region98: #{hgdc_c_forward.1} parent=1 // pred_check
      _
    $region99: #{hgdc_c_forward.1} parent=1 // pred_check_branch
      %251 = sbr.rel (0) target = $region101
    $region100: #{hgdc_c_forward.1} parent=1 // pred_region
      _
    $region101: #{hgdc_c_forward.1} parent=1 // pred_fallthru
      _
    // Predicated region
    $region102: #{hgdc_c_forward.1} parent=1 // pred_check
      _
    $region103: #{hgdc_c_forward.1} parent=1 // pred_check_branch
      %253 = sbr.rel (0) target = $region105
    $region104: #{hgdc_c_forward.1} parent=1 // pred_region
      _
    $region105: #{hgdc_c_forward.1} parent=1 // pred_fallthru
      _
    // Predicated region
    $region106: #{hgdc_c_forward.1} parent=1 // pred_check
      _
    $region107: #{hgdc_c_forward.1} parent=1 // pred_check_branch
      %255 = sbr.rel (0) target = $region109
    $region108: #{hgdc_c_forward.1} parent=1 // pred_region
      _
    $region109: #{hgdc_c_forward.1} parent=1 // pred_fallthru
      _
    // Predicated region
    $region110: #{hgdc_c_forward.1} parent=1 // pred_check
      _
    $region111: #{hgdc_c_forward.1} parent=1 // pred_check_branch
      %257 = sbr.rel (0) target = $region113
    $region112: #{hgdc_c_forward.1} parent=1 // pred_region
      _
    $region113: #{hgdc_c_forward.1} parent=1 // pred_fallthru
      _
    // Predicated region
    $region114: #{hgdc_c_forward.1} parent=1 // pred_check
      _
    $region115: #{hgdc_c_forward.1} parent=1 // pred_check_branch
      %259 = sbr.rel (0) target = $region117
    $region116: #{hgdc_c_forward.1} parent=1 // pred_region
      _
    $region117: #{hgdc_c_forward.1} parent=1 // pred_fallthru
      _
    // Predicated region
    $region118: #{hgdc_c_forward.1} parent=1 // pred_check
      _
    $region119: #{hgdc_c_forward.1} parent=1 // pred_check_branch
      %261 = sbr.rel (0) target = $region121
    $region120: #{hgdc_c_forward.1} parent=1 // pred_region
      %262 = dma.done [#allocation4], 128
    $region121: #{hgdc_c_forward.1} parent=1 // pred_fallthru
      _
    // Predicated region
    $region122: #{hgdc_c_forward.1} parent=1 // pred_check
      _
    $region123: #{hgdc_c_forward.1} parent=1 // pred_check_branch
      %264 = sbr.rel (0) target = $region125
    $region124: #{hgdc_c_forward.1} parent=1 // pred_region
      %265 = dma.done [#allocation6], 16
    $region125: #{hgdc_c_forward.1} parent=1 // pred_fallthru
      _
    // Predicated region
    $region126: #{hgdc_c_forward.1} parent=1 // pred_check
      _
    $region127: #{hgdc_c_forward.1} parent=1 // pred_check_branch
      %267 = sbr.rel (0) target = $region129
    $region128: #{hgdc_c_forward.1} parent=1 // pred_region
      %268 = dma.done [#allocation6], 256
    $region129: #{hgdc_c_forward.1} parent=1 // pred_fallthru
      _
    // Predicated region
    $region130: #{hgdc_c_forward.1} parent=1 // pred_check
      _
    $region131: #{hgdc_c_forward.1} parent=1 // pred_check_branch
      %270 = sbr.rel (0) target = $region133
    $region132: #{hgdc_c_forward.1} parent=1 // pred_region
      %271 = dma.done [#allocation9], 256
    $region133: #{hgdc_c_forward.1} parent=1 // pred_fallthru
      _
    // Predicated region
    $region134: #{hgdc_c_forward.1} parent=1 // pred_check
      _
    $region135: #{hgdc_c_forward.1} parent=1 // pred_check_branch
      %273 = sbr.rel (0) target = $region137
    $region136: #{hgdc_c_forward.1} parent=1 // pred_region
      %274 = dma.done [#allocation9], 16
    $region137: #{hgdc_c_forward.1} parent=1 // pred_fallthru
      _
    // Predicated region
    $region138: #{hgdc_c_forward.1} parent=1 // pred_check
      _
    $region139: #{hgdc_c_forward.1} parent=1 // pred_check_branch
      %276 = sbr.rel (0) target = $region141
    $region140: #{hgdc_c_forward.1} parent=1 // pred_region
      %277 = dma.done [#allocation12], 16
    $region141: #{hgdc_c_forward.1} parent=1 // pred_fallthru
      _
    // Predicated region
    $region142: #{hgdc_c_forward.1} parent=1 // pred_check
      _
    $region143: #{hgdc_c_forward.1} parent=1 // pred_check_branch
      %279 = sbr.rel (0) target = $region145
    $region144: #{hgdc_c_forward.1} parent=1 // pred_region
      %280 = dma.done [#allocation12], 256
    $region145: #{hgdc_c_forward.1} parent=1 // pred_fallthru
      _
    // Predicated region
    $region146: #{hgdc_c_forward.1} parent=1 // pred_check
      _
    $region147: #{hgdc_c_forward.1} parent=1 // pred_check_branch
      %282 = sbr.rel (0) target = $region149
    $region148: #{hgdc_c_forward.1} parent=1 // pred_region
      %283 = dma.done [#allocation15], 256
    $region149: #{hgdc_c_forward.1} parent=1 // pred_fallthru
      _
    // Predicated region
    $region150: #{hgdc_c_forward.1} parent=1 // pred_check
      _
    $region151: #{hgdc_c_forward.1} parent=1 // pred_check_branch
      %285 = sbr.rel (0) target = $region153
    $region152: #{hgdc_c_forward.1} parent=1 // pred_region
      %286 = dma.done [#allocation15], 16
    $region153: #{hgdc_c_forward.1} parent=1 // pred_fallthru
      _
    // Predicated region
    $region154: #{hgdc_c_forward.1} parent=1 // pred_check
      _
    $region155: #{hgdc_c_forward.1} parent=1 // pred_check_branch
      %288 = sbr.rel (0) target = $region157
    $region156: #{hgdc_c_forward.1} parent=1 // pred_region
      %289 = dma.done [#allocation18], 16
    $region157: #{hgdc_c_forward.1} parent=1 // pred_fallthru
      _
    // Predicated region
    $region158: #{hgdc_c_forward.1} parent=1 // pred_check
      _
    $region159: #{hgdc_c_forward.1} parent=1 // pred_check_branch
      %291 = sbr.rel (0) target = $region161
    $region160: #{hgdc_c_forward.1} parent=1 // pred_region
      %292 = dma.done [#allocation18], 256
    $region161: #{hgdc_c_forward.1} parent=1 // pred_fallthru
      _
    // Predicated region
    $region162: #{hgdc_c_forward.1} parent=1 // pred_check
      _
    $region163: #{hgdc_c_forward.1} parent=1 // pred_check_branch
      %294 = sbr.rel (0) target = $region165
    $region164: #{hgdc_c_forward.1} parent=1 // pred_region
      %295 = dma.done [#allocation21], 256
    $region165: #{hgdc_c_forward.1} parent=1 // pred_fallthru
      _
    // Predicated region
    $region166: #{hgdc_c_forward.1} parent=1 // pred_check
      _
    $region167: #{hgdc_c_forward.1} parent=1 // pred_check_branch
      %297 = sbr.rel (0) target = $region169
    $region168: #{hgdc_c_forward.1} parent=1 // pred_region
      %298 = dma.done [#allocation21], 256
    $region169: #{hgdc_c_forward.1} parent=1 // pred_fallthru
      _
    // Predicated region
    $region170: #{hgdc_c_forward.1} parent=1 // pred_check
      _
    $region171: #{hgdc_c_forward.1} parent=1 // pred_check_branch
      %300 = sbr.rel (0) target = $region173
    $region172: #{hgdc_c_forward.1} parent=1 // pred_region
      %301 = dma.done [#allocation24], 16
    $region173: #{hgdc_c_forward.1} parent=1 // pred_fallthru
      _
    %v303 = vld [vmem:[%s1] sm:$0xf]
    %v304 = vld [vmem:[%s1 + $0x4] sm:$0xf]
    %v305 = vld [vmem:[%s1 + $0x8] sm:$0xf]
    %v306 = vld [vmem:[%s1 + $0xc] sm:$0xf]
    %v307 = vld [vmem:[%s1 + $0x10] sm:$0xf]
    %v308 = vld [vmem:[%s1 + $0x14] sm:$0xf]
    %v309 = vld [vmem:[%s1 + $0x18] sm:$0xf]
    %v310 = vld [vmem:[%s1 + $0x1c] sm:$0xf]
    %v311 = vld [vmem:[%s3] sm:$0xf]
    %v312 = vld [vmem:[%s3 + $0x4] sm:$0xf]
    %v313 = vld [vmem:[%s3 + $0x8] sm:$0xf]
    %v314 = vld [vmem:[%s3 + $0xc] sm:$0xf]
    %v315 = vld [vmem:[%s3 + $0x10] sm:$0xf]
    %v316 = vld [vmem:[%s3 + $0x14] sm:$0xf]
    %v317 = vld [vmem:[%s3 + $0x18] sm:$0xf]
    %v318 = vld [vmem:[%s3 + $0x1c] sm:$0xf]
    %v319 = vld [vmem:[%s5] sm:$0xf]
    %v320 = vld [vmem:[%s5 + $0x4] sm:$0xf]
    %v321 = vld [vmem:[%s5 + $0x8] sm:$0xf]
    %v322 = vld [vmem:[%s5 + $0xc] sm:$0xf]
    %v323 = vld [vmem:[%s5 + $0x10] sm:$0xf]
    %v324 = vld [vmem:[%s5 + $0x14] sm:$0xf]
    %v325 = vld [vmem:[%s5 + $0x18] sm:$0xf]
    %v326 = vld [vmem:[%s5 + $0x1c] sm:$0xf]
    %v327 = vld [vmem:[#allocation3] sm:$0xf]
    %v328 = vld [vmem:[#allocation3 + $0x4] sm:$0xf]
    %v329 = vld [vmem:[#allocation5] sm:$0x1]
    %v331 = vlaneseq
    %v332 = vshrl.u32 %v331, 7
    %v333 = vsub.s32 0, %v332
    %v334 = vrot.slane %v329, %v333
    %v344 = vunpack.c.l.b16 %v319
    %v345 = vunpack.c.l.b16 %v320
    %v346 = vunpack.c.l.b16 %v321
    %v347 = vunpack.c.l.b16 %v322
    %v348 = vunpack.c.l.b16 %v323
    %v349 = vunpack.c.l.b16 %v324
    %v350 = vunpack.c.l.b16 %v325
    %v351 = vunpack.c.l.b16 %v326
    %v352 = vpack.c.b16 %v345, %v344
    %v353 = vpack.c.b16 %v347, %v346
    %v354 = vpack.c.b16 %v349, %v348
    %v355 = vpack.c.b16 %v351, %v350
    %v358 = vunpack.c.l.b16 %v327
    %v359 = vunpack.c.l.b16 %v328
    %v360 = vpack.c.b16 %v359, %v358
    %vm362 = vcmask 130048
    %v364 = vsel %vm362, %v352, 0
    %v367 = vsel %vm362, %v353, 0
    %v370 = vsel %vm362, %v354, 0
    %v373 = vsel %vm362, %v355, 0
    %375 = vmatprep.subr.bf16.mxu0 0
    %376 = vmatpush1.bf16.msra.mxu0 %v360
    %377 = vmatprep.subr.bf16.mxu0 0
    %378 = vmatpush1.bf16.msra.mxu0 0
    %379 = vmatprep.subr.bf16.mxu0 0
    %380 = vmatpush1.bf16.msra.mxu0 0
    %381 = vmatprep.subr.bf16.mxu0 0
    %382 = vmatpush1.bf16.msra.mxu0 0
    %383 = vmatprep.subr.bf16.mxu0 0
    %384 = vmatpush1.bf16.msra.mxu0 0
    %385 = vmatprep.subr.bf16.mxu0 0
    %386 = vmatpush1.bf16.msra.mxu0 0
    %387 = vmatprep.subr.bf16.mxu0 0
    %388 = vmatpush1.bf16.msra.mxu0 0
    %389 = vmatprep.subr.bf16.mxu0 0
    %390 = vmatpush1.bf16.msra.mxu0 0
    %391 = vmatprep.subr.bf16.mxu0 0
    %392 = vmatpush1.bf16.msra.mxu0 0
    %393 = vmatprep.subr.bf16.mxu0 0
    %394 = vmatpush1.bf16.msra.mxu0 0
    %395 = vmatprep.subr.bf16.mxu0 0
    %396 = vmatpush1.bf16.msra.mxu0 0
    %397 = vmatprep.subr.bf16.mxu0 0
    %398 = vmatpush1.bf16.msra.mxu0 0
    %399 = vmatprep.subr.bf16.mxu0 0
    %400 = vmatpush1.bf16.msra.mxu0 0
    %401 = vmatprep.subr.bf16.mxu0 0
    %402 = vmatpush1.bf16.msra.mxu0 0
    %403 = vmatprep.subr.bf16.mxu0 0
    %404 = vmatpush1.bf16.msra.mxu0 0
    %405 = vmatprep.subr.bf16.mxu0 0
    %406 = vmatpush1.bf16.msra.mxu0 0
    %407 = vmatprep.mubr.bf16.mxu0 0
    %408 = vmatmul.mubr.bf16.gmra.mrb[0].mxu0 %v364
    %v409 = vpop.f32.mrb[0].mxu0
    %v410 = vadd.f32 %v334, %v409
    %v411 = vpop.f32.mrb[0].mxu0
    %v412 = vpop.f32.mrb[0].mxu0
    %v413 = vadd.f32 %v334, %v412
    %v414 = vpop.f32.mrb[0].mxu0
    %415 = vmatprep.mubr.bf16.mxu0 0
    %416 = vmatmul.mubr.bf16.gmra.mrb[0].mxu0 %v367
    %v417 = vpop.f32.mrb[0].mxu0
    %v418 = vadd.f32 %v334, %v417
    %v419 = vpop.f32.mrb[0].mxu0
    %v420 = vpop.f32.mrb[0].mxu0
    %v421 = vadd.f32 %v334, %v420
    %v422 = vpop.f32.mrb[0].mxu0
    %423 = vmatprep.mubr.bf16.mxu0 0
    %424 = vmatmul.mubr.bf16.gmra.mrb[0].mxu0 %v370
    %v425 = vpop.f32.mrb[0].mxu0
    %v426 = vadd.f32 %v334, %v425
    %v427 = vpop.f32.mrb[0].mxu0
    %v428 = vpop.f32.mrb[0].mxu0
    %v429 = vadd.f32 %v334, %v428
    %v430 = vpop.f32.mrb[0].mxu0
    %431 = vmatprep.mubr.bf16.mxu0 0
    %432 = vmatmul.mubr.bf16.gmra.mrb[0].mxu0 %v373
    %v433 = vpop.f32.mrb[0].mxu0
    %v434 = vadd.f32 %v334, %v433
    %v435 = vpop.f32.mrb[0].mxu0
    %v436 = vpop.f32.mrb[0].mxu0
    %v437 = vadd.f32 %v334, %v436
    %v438 = vpop.f32.mrb[0].mxu0
    %439 = vdwg.mxu0
    %v440 = vmax.f32 %v410, 0.0
    %v441 = vmax.f32 %v413, 0.0
    %v442 = vmax.f32 %v418, 0.0
    %v443 = vmax.f32 %v421, 0.0
    %v444 = vmax.f32 %v426, 0.0
    %v445 = vmax.f32 %v429, 0.0
    %v446 = vmax.f32 %v434, 0.0
    %v447 = vmax.f32 %v437, 0.0
    %v448 = vpack.c.bf16 %v441, %v440
    %v449 = vpack.c.bf16 %v443, %v442
    %v450 = vpack.c.bf16 %v445, %v444
    %v451 = vpack.c.bf16 %v447, %v446
    %v452 = vld [vmem:[#allocation7] sm:$0xf]
    %v453 = vld [vmem:[#allocation7 + $0x4] sm:$0xf]
    %v454 = vld [vmem:[#allocation7 + $0x8] sm:$0xf]
    %v455 = vld [vmem:[#allocation7 + $0xc] sm:$0xf]
    %v460 = vunpack.c.l.b16 %v452
    %v461 = vunpack.c.l.b16 %v453
    %v462 = vunpack.c.l.b16 %v454
    %v463 = vunpack.c.l.b16 %v455
    %v464 = vpack.c.b16 %v461, %v460
    %v465 = vpack.c.b16 %v463, %v462
    %vm468 = vcmask 261120
    %v470 = vsel %vm468, %v448, 0
    %v473 = vsel %vm468, %v449, 0
    %v476 = vsel %vm468, %v450, 0
    %v479 = vsel %vm468, %v451, 0
    %481 = vmatprep.subr.bf16.mxu0 0
    %482 = vmatpush1.bf16.msra.mxu0 %v464
    %483 = vmatprep.subr.bf16.mxu0 0
    %484 = vmatpush1.bf16.msra.mxu0 %v465
    %485 = vmatprep.subr.bf16.mxu0 0
    %486 = vmatpush1.bf16.msra.mxu0 0
    %487 = vmatprep.subr.bf16.mxu0 0
    %488 = vmatpush1.bf16.msra.mxu0 0
    %489 = vmatprep.subr.bf16.mxu0 0
    %490 = vmatpush1.bf16.msra.mxu0 0
    %491 = vmatprep.subr.bf16.mxu0 0
    %492 = vmatpush1.bf16.msra.mxu0 0
    %493 = vmatprep.subr.bf16.mxu0 0
    %494 = vmatpush1.bf16.msra.mxu0 0
    %495 = vmatprep.subr.bf16.mxu0 0
    %496 = vmatpush1.bf16.msra.mxu0 0
    %497 = vmatprep.subr.bf16.mxu0 0
    %498 = vmatpush1.bf16.msra.mxu0 0
    %499 = vmatprep.subr.bf16.mxu0 0
    %500 = vmatpush1.bf16.msra.mxu0 0
    %501 = vmatprep.subr.bf16.mxu0 0
    %502 = vmatpush1.bf16.msra.mxu0 0
    %503 = vmatprep.subr.bf16.mxu0 0
    %504 = vmatpush1.bf16.msra.mxu0 0
    %505 = vmatprep.subr.bf16.mxu0 0
    %506 = vmatpush1.bf16.msra.mxu0 0
    %507 = vmatprep.subr.bf16.mxu0 0
    %508 = vmatpush1.bf16.msra.mxu0 0
    %509 = vmatprep.subr.bf16.mxu0 0
    %510 = vmatpush1.bf16.msra.mxu0 0
    %511 = vmatprep.subr.bf16.mxu0 0
    %512 = vmatpush1.bf16.msra.mxu0 0
    %513 = vmatprep.mubr.bf16.mxu0 0
    %514 = vmatmul.mubr.bf16.gmra.mrb[0].mxu0 %v470
    %v515 = vpop.f32.mrb[0].mxu0
    %v516 = vadd.f32 0.0, %v515
    %v517 = vpop.f32.mrb[0].mxu0
    %v518 = vpop.f32.mrb[0].mxu0
    %v519 = vadd.f32 0.0, %v518
    %v520 = vpop.f32.mrb[0].mxu0
    %521 = vmatprep.mubr.bf16.mxu0 0
    %522 = vmatmul.mubr.bf16.gmra.mrb[0].mxu0 %v473
    %v523 = vpop.f32.mrb[0].mxu0
    %v524 = vadd.f32 0.0, %v523
    %v525 = vpop.f32.mrb[0].mxu0
    %v526 = vpop.f32.mrb[0].mxu0
    %v527 = vadd.f32 0.0, %v526
    %v528 = vpop.f32.mrb[0].mxu0
    %529 = vmatprep.mubr.bf16.mxu0 0
    %530 = vmatmul.mubr.bf16.gmra.mrb[0].mxu0 %v476
    %v531 = vpop.f32.mrb[0].mxu0
    %v532 = vadd.f32 0.0, %v531
    %v533 = vpop.f32.mrb[0].mxu0
    %v534 = vpop.f32.mrb[0].mxu0
    %v535 = vadd.f32 0.0, %v534
    %v536 = vpop.f32.mrb[0].mxu0
    %537 = vmatprep.mubr.bf16.mxu0 0
    %538 = vmatmul.mubr.bf16.gmra.mrb[0].mxu0 %v479
    %v539 = vpop.f32.mrb[0].mxu0
    %v540 = vadd.f32 0.0, %v539
    %v541 = vpop.f32.mrb[0].mxu0
    %v542 = vpop.f32.mrb[0].mxu0
    %v543 = vadd.f32 0.0, %v542
    %v544 = vpop.f32.mrb[0].mxu0
    %545 = vdwg.mxu0
    %v546 = vpack.c.bf16 %v519, %v516
    %v547 = vpack.c.bf16 %v527, %v524
    %v548 = vpack.c.bf16 %v535, %v532
    %v549 = vpack.c.bf16 %v543, %v540
    %v550 = vld [vmem:[#allocation8] sm:$0xf]
    %v551 = vld [vmem:[#allocation8 + $0x4] sm:$0xf]
    %v552 = vld [vmem:[#allocation8 + $0x8] sm:$0xf]
    %v553 = vld [vmem:[#allocation8 + $0xc] sm:$0xf]
    %v558 = vunpack.c.l.b16 %v550
    %v559 = vunpack.c.l.b16 %v551
    %v560 = vunpack.c.l.b16 %v552
    %v561 = vunpack.c.l.b16 %v553
    %v562 = vpack.c.b16 %v559, %v558
    %v563 = vpack.c.b16 %v561, %v560
    %566 = vmatprep.subr.bf16.mxu0 0
    %567 = vmatpush1.bf16.msra.mxu0 %v562
    %568 = vmatprep.subr.bf16.mxu0 0
    %569 = vmatpush1.bf16.msra.mxu0 %v563
    %570 = vmatprep.subr.bf16.mxu0 0
    %571 = vmatpush1.bf16.msra.mxu0 0
    %572 = vmatprep.subr.bf16.mxu0 0
    %573 = vmatpush1.bf16.msra.mxu0 0
    %574 = vmatprep.subr.bf16.mxu0 0
    %575 = vmatpush1.bf16.msra.mxu0 0
    %576 = vmatprep.subr.bf16.mxu0 0
    %577 = vmatpush1.bf16.msra.mxu0 0
    %578 = vmatprep.subr.bf16.mxu0 0
    %579 = vmatpush1.bf16.msra.mxu0 0
    %580 = vmatprep.subr.bf16.mxu0 0
    %581 = vmatpush1.bf16.msra.mxu0 0
    %582 = vmatprep.subr.bf16.mxu0 0
    %583 = vmatpush1.bf16.msra.mxu0 0
    %584 = vmatprep.subr.bf16.mxu0 0
    %585 = vmatpush1.bf16.msra.mxu0 0
    %586 = vmatprep.subr.bf16.mxu0 0
    %587 = vmatpush1.bf16.msra.mxu0 0
    %588 = vmatprep.subr.bf16.mxu0 0
    %589 = vmatpush1.bf16.msra.mxu0 0
    %590 = vmatprep.subr.bf16.mxu0 0
    %591 = vmatpush1.bf16.msra.mxu0 0
    %592 = vmatprep.subr.bf16.mxu0 0
    %593 = vmatpush1.bf16.msra.mxu0 0
    %594 = vmatprep.subr.bf16.mxu0 0
    %595 = vmatpush1.bf16.msra.mxu0 0
    %596 = vmatprep.subr.bf16.mxu0 0
    %597 = vmatpush1.bf16.msra.mxu0 0
    %598 = vmatprep.mubr.bf16.mxu0 0
    %599 = vmatmul.mubr.bf16.gmra.mrb[0].mxu0 %v470
    %v600 = vpop.f32.mrb[0].mxu0
    %v601 = vadd.f32 0.0, %v600
    %v602 = vpop.f32.mrb[0].mxu0
    %v603 = vpop.f32.mrb[0].mxu0
    %v604 = vadd.f32 0.0, %v603
    %v605 = vpop.f32.mrb[0].mxu0
    %606 = vmatprep.mubr.bf16.mxu0 0
    %607 = vmatmul.mubr.bf16.gmra.mrb[0].mxu0 %v473
    %v608 = vpop.f32.mrb[0].mxu0
    %v609 = vadd.f32 0.0, %v608
    %v610 = vpop.f32.mrb[0].mxu0
    %v611 = vpop.f32.mrb[0].mxu0
    %v612 = vadd.f32 0.0, %v611
    %v613 = vpop.f32.mrb[0].mxu0
    %614 = vmatprep.mubr.bf16.mxu0 0
    %615 = vmatmul.mubr.bf16.gmra.mrb[0].mxu0 %v476
    %v616 = vpop.f32.mrb[0].mxu0
    %v617 = vadd.f32 0.0, %v616
    %v618 = vpop.f32.mrb[0].mxu0
    %v619 = vpop.f32.mrb[0].mxu0
    %v620 = vadd.f32 0.0, %v619
    %v621 = vpop.f32.mrb[0].mxu0
    %622 = vmatprep.mubr.bf16.mxu0 0
    %623 = vmatmul.mubr.bf16.gmra.mrb[0].mxu0 %v479
    %v624 = vpop.f32.mrb[0].mxu0
    %v625 = vadd.f32 0.0, %v624
    %v626 = vpop.f32.mrb[0].mxu0
    %v627 = vpop.f32.mrb[0].mxu0
    %v628 = vadd.f32 0.0, %v627
    %v629 = vpop.f32.mrb[0].mxu0
    %630 = vdwg.mxu0
    %v631 = vpack.c.bf16 %v604, %v601
    %v632 = vpack.c.bf16 %v612, %v609
    %v633 = vpack.c.bf16 %v620, %v617
    %v634 = vpack.c.bf16 %v628, %v625
    %v635 = vld [vmem:[#allocation10] sm:$0x1]
    %v637 = vlaneseq
    %v638 = vshrl.u32 %v637, 7
    %v639 = vsub.s32 0, %v638
    %v640 = vrot.slane %v635, %v639
    %v650 = vunpack.c.l.b16 %v303
    %v651 = vunpack.c.l.b16 %v304
    %v652 = vunpack.c.l.b16 %v305
    %v653 = vunpack.c.l.b16 %v306
    %v654 = vunpack.c.l.b16 %v307
    %v655 = vunpack.c.l.b16 %v308
    %v656 = vunpack.c.l.b16 %v309
    %v657 = vunpack.c.l.b16 %v310
    %v658 = vpack.c.b16 %v651, %v650
    %v659 = vpack.c.b16 %v653, %v652
    %v660 = vpack.c.b16 %v655, %v654
    %v661 = vpack.c.b16 %v657, %v656
    %vm662 = vcmask 523264
    %v664 = vsel %vm662, %v658, 0
    %v667 = vsel %vm662, %v659, 0
    %v670 = vsel %vm662, %v660, 0
    %v673 = vsel %vm662, %v661, 0
    %675 = vmatprep.subr.bf16.mxu0 0
    %676 = vmatpush1.bf16.msra.mxu0 %v546
    %677 = vmatprep.subr.bf16.mxu0 0
    %678 = vmatpush1.bf16.msra.mxu0 %v547
    %679 = vmatprep.subr.bf16.mxu0 0
    %680 = vmatpush1.bf16.msra.mxu0 %v548
    %681 = vmatprep.subr.bf16.mxu0 0
    %682 = vmatpush1.bf16.msra.mxu0 %v549
    %683 = vmatprep.subr.bf16.mxu0 0
    %684 = vmatpush1.bf16.msra.mxu0 0
    %685 = vmatprep.subr.bf16.mxu0 0
    %686 = vmatpush1.bf16.msra.mxu0 0
    %687 = vmatprep.subr.bf16.mxu0 0
    %688 = vmatpush1.bf16.msra.mxu0 0
    %689 = vmatprep.subr.bf16.mxu0 0
    %690 = vmatpush1.bf16.msra.mxu0 0
    %691 = vmatprep.subr.bf16.mxu0 0
    %692 = vmatpush1.bf16.msra.mxu0 0
    %693 = vmatprep.subr.bf16.mxu0 0
    %694 = vmatpush1.bf16.msra.mxu0 0
    %695 = vmatprep.subr.bf16.mxu0 0
    %696 = vmatpush1.bf16.msra.mxu0 0
    %697 = vmatprep.subr.bf16.mxu0 0
    %698 = vmatpush1.bf16.msra.mxu0 0
    %699 = vmatprep.subr.bf16.mxu0 0
    %700 = vmatpush1.bf16.msra.mxu0 0
    %701 = vmatprep.subr.bf16.mxu0 0
    %702 = vmatpush1.bf16.msra.mxu0 0
    %703 = vmatprep.subr.bf16.mxu0 0
    %704 = vmatpush1.bf16.msra.mxu0 0
    %705 = vmatprep.subr.bf16.mxu0 0
    %706 = vmatpush1.bf16.msra.mxu0 0
    %707 = vmatprep.mubr.bf16.mxu0 0
    %708 = vmatmul.mubr.bf16.gmra.mrb[0].mxu0 %v664
    %v709 = vpop.f32.mrb[0].mxu0
    %v710 = vadd.f32 %v640, %v709
    %v711 = vpop.f32.mrb[0].mxu0
    %v712 = vpop.f32.mrb[0].mxu0
    %v713 = vadd.f32 %v640, %v712
    %v714 = vpop.f32.mrb[0].mxu0
    %715 = vmatprep.mubr.bf16.mxu0 0
    %716 = vmatmul.mubr.bf16.gmra.mrb[0].mxu0 %v667
    %v717 = vpop.f32.mrb[0].mxu0
    %v718 = vadd.f32 %v640, %v717
    %v719 = vpop.f32.mrb[0].mxu0
    %v720 = vpop.f32.mrb[0].mxu0
    %v721 = vadd.f32 %v640, %v720
    %v722 = vpop.f32.mrb[0].mxu0
    %723 = vmatprep.mubr.bf16.mxu0 0
    %724 = vmatmul.mubr.bf16.gmra.mrb[0].mxu0 %v670
    %v725 = vpop.f32.mrb[0].mxu0
    %v726 = vadd.f32 %v640, %v725
    %v727 = vpop.f32.mrb[0].mxu0
    %v728 = vpop.f32.mrb[0].mxu0
    %v729 = vadd.f32 %v640, %v728
    %v730 = vpop.f32.mrb[0].mxu0
    %731 = vmatprep.mubr.bf16.mxu0 0
    %732 = vmatmul.mubr.bf16.gmra.mrb[0].mxu0 %v673
    %v733 = vpop.f32.mrb[0].mxu0
    %v734 = vadd.f32 %v640, %v733
    %v735 = vpop.f32.mrb[0].mxu0
    %v736 = vpop.f32.mrb[0].mxu0
    %v737 = vadd.f32 %v640, %v736
    %v738 = vpop.f32.mrb[0].mxu0
    %739 = vdwg.mxu0
    %v740 = vld [vmem:[#allocation11] sm:$0x1]
    %v742 = vlaneseq
    %v743 = vshrl.u32 %v742, 7
    %v744 = vsub.s32 0, %v743
    %v745 = vrot.slane %v740, %v744
    %v755 = vunpack.c.l.b16 %v311
    %v756 = vunpack.c.l.b16 %v312
    %v757 = vunpack.c.l.b16 %v313
    %v758 = vunpack.c.l.b16 %v314
    %v759 = vunpack.c.l.b16 %v315
    %v760 = vunpack.c.l.b16 %v316
    %v761 = vunpack.c.l.b16 %v317
    %v762 = vunpack.c.l.b16 %v318
    %v763 = vpack.c.b16 %v756, %v755
    %v764 = vpack.c.b16 %v758, %v757
    %v765 = vpack.c.b16 %v760, %v759
    %v766 = vpack.c.b16 %v762, %v761
    %v768 = vsel %vm662, %v763, 0
    %v771 = vsel %vm662, %v764, 0
    %v774 = vsel %vm662, %v765, 0
    %v777 = vsel %vm662, %v766, 0
    %779 = vmatprep.subr.bf16.mxu0 0
    %780 = vmatpush1.bf16.msra.mxu0 %v631
    %781 = vmatprep.subr.bf16.mxu0 0
    %782 = vmatpush1.bf16.msra.mxu0 %v632
    %783 = vmatprep.subr.bf16.mxu0 0
    %784 = vmatpush1.bf16.msra.mxu0 %v633
    %785 = vmatprep.subr.bf16.mxu0 0
    %786 = vmatpush1.bf16.msra.mxu0 %v634
    %787 = vmatprep.subr.bf16.mxu0 0
    %788 = vmatpush1.bf16.msra.mxu0 0
    %789 = vmatprep.subr.bf16.mxu0 0
    %790 = vmatpush1.bf16.msra.mxu0 0
    %791 = vmatprep.subr.bf16.mxu0 0
    %792 = vmatpush1.bf16.msra.mxu0 0
    %793 = vmatprep.subr.bf16.mxu0 0
    %794 = vmatpush1.bf16.msra.mxu0 0
    %795 = vmatprep.subr.bf16.mxu0 0
    %796 = vmatpush1.bf16.msra.mxu0 0
    %797 = vmatprep.subr.bf16.mxu0 0
    %798 = vmatpush1.bf16.msra.mxu0 0
    %799 = vmatprep.subr.bf16.mxu0 0
    %800 = vmatpush1.bf16.msra.mxu0 0
    %801 = vmatprep.subr.bf16.mxu0 0
    %802 = vmatpush1.bf16.msra.mxu0 0
    %803 = vmatprep.subr.bf16.mxu0 0
    %804 = vmatpush1.bf16.msra.mxu0 0
    %805 = vmatprep.subr.bf16.mxu0 0
    %806 = vmatpush1.bf16.msra.mxu0 0
    %807 = vmatprep.subr.bf16.mxu0 0
    %808 = vmatpush1.bf16.msra.mxu0 0
    %809 = vmatprep.subr.bf16.mxu0 0
    %810 = vmatpush1.bf16.msra.mxu0 0
    %811 = vmatprep.mubr.bf16.mxu0 0
    %812 = vmatmul.mubr.bf16.gmra.mrb[0].mxu0 %v768
    %v813 = vpop.f32.mrb[0].mxu0
    %v814 = vadd.f32 %v745, %v813
    %v815 = vpop.f32.mrb[0].mxu0
    %v816 = vpop.f32.mrb[0].mxu0
    %v817 = vadd.f32 %v745, %v816
    %v818 = vpop.f32.mrb[0].mxu0
    %819 = vmatprep.mubr.bf16.mxu0 0
    %820 = vmatmul.mubr.bf16.gmra.mrb[0].mxu0 %v771
    %v821 = vpop.f32.mrb[0].mxu0
    %v822 = vadd.f32 %v745, %v821
    %v823 = vpop.f32.mrb[0].mxu0
    %v824 = vpop.f32.mrb[0].mxu0
    %v825 = vadd.f32 %v745, %v824
    %v826 = vpop.f32.mrb[0].mxu0
    %827 = vmatprep.mubr.bf16.mxu0 0
    %828 = vmatmul.mubr.bf16.gmra.mrb[0].mxu0 %v774
    %v829 = vpop.f32.mrb[0].mxu0
    %v830 = vadd.f32 %v745, %v829
    %v831 = vpop.f32.mrb[0].mxu0
    %v832 = vpop.f32.mrb[0].mxu0
    %v833 = vadd.f32 %v745, %v832
    %v834 = vpop.f32.mrb[0].mxu0
    %835 = vmatprep.mubr.bf16.mxu0 0
    %836 = vmatmul.mubr.bf16.gmra.mrb[0].mxu0 %v777
    %v837 = vpop.f32.mrb[0].mxu0
    %v838 = vadd.f32 %v745, %v837
    %v839 = vpop.f32.mrb[0].mxu0
    %v840 = vpop.f32.mrb[0].mxu0
    %v841 = vadd.f32 %v745, %v840
    %v842 = vpop.f32.mrb[0].mxu0
    %843 = vdwg.mxu0
    %v844 = vpack.c.bf16 %v713, %v710
    %v845 = vpack.c.bf16 %v721, %v718
    %v846 = vpack.c.bf16 %v729, %v726
    %v847 = vpack.c.bf16 %v737, %v734
    %v848 = vpack.c.bf16 %v817, %v814
    %v849 = vpack.c.bf16 %v825, %v822
    %v850 = vpack.c.bf16 %v833, %v830
    %v851 = vpack.c.bf16 %v841, %v838
    %v852 = vld [vmem:[%s19] sm:$0xf]
    %v853 = vld [vmem:[%s19 + $0x4] sm:$0xf]
    %v854 = vld [vmem:[%s19 + $0x8] sm:$0xf]
    %v855 = vld [vmem:[%s19 + $0xc] sm:$0xf]
    %v856 = vld [vmem:[#allocation13] sm:$0xf]
    %v857 = vld [vmem:[#allocation13 + $0x4] sm:$0xf]
    %v858 = vld [vmem:[#allocation13 + $0x8] sm:$0xf]
    %v859 = vld [vmem:[#allocation13 + $0xc] sm:$0xf]
    %v864 = vunpack.c.l.b16 %v856
    %v865 = vunpack.c.l.b16 %v857
    %v866 = vunpack.c.l.b16 %v858
    %v867 = vunpack.c.l.b16 %v859
    %v868 = vpack.c.b16 %v865, %v864
    %v869 = vpack.c.b16 %v867, %v866
    %v873 = vsel %vm468, %v848, 0
    %v876 = vsel %vm468, %v849, 0
    %v879 = vsel %vm468, %v850, 0
    %v882 = vsel %vm468, %v851, 0
    %884 = vmatprep.subr.bf16.mxu0 0
    %885 = vmatpush1.bf16.msra.mxu0 %v868
    %886 = vmatprep.subr.bf16.mxu0 0
    %887 = vmatpush1.bf16.msra.mxu0 %v869
    %888 = vmatprep.subr.bf16.mxu0 0
    %889 = vmatpush1.bf16.msra.mxu0 0
    %890 = vmatprep.subr.bf16.mxu0 0
    %891 = vmatpush1.bf16.msra.mxu0 0
    %892 = vmatprep.subr.bf16.mxu0 0
    %893 = vmatpush1.bf16.msra.mxu0 0
    %894 = vmatprep.subr.bf16.mxu0 0
    %895 = vmatpush1.bf16.msra.mxu0 0
    %896 = vmatprep.subr.bf16.mxu0 0
    %897 = vmatpush1.bf16.msra.mxu0 0
    %898 = vmatprep.subr.bf16.mxu0 0
    %899 = vmatpush1.bf16.msra.mxu0 0
    %900 = vmatprep.subr.bf16.mxu0 0
    %901 = vmatpush1.bf16.msra.mxu0 0
    %902 = vmatprep.subr.bf16.mxu0 0
    %903 = vmatpush1.bf16.msra.mxu0 0
    %904 = vmatprep.subr.bf16.mxu0 0
    %905 = vmatpush1.bf16.msra.mxu0 0
    %906 = vmatprep.subr.bf16.mxu0 0
    %907 = vmatpush1.bf16.msra.mxu0 0
    %908 = vmatprep.subr.bf16.mxu0 0
    %909 = vmatpush1.bf16.msra.mxu0 0
    %910 = vmatprep.subr.bf16.mxu0 0
    %911 = vmatpush1.bf16.msra.mxu0 0
    %912 = vmatprep.subr.bf16.mxu0 0
    %913 = vmatpush1.bf16.msra.mxu0 0
    %914 = vmatprep.subr.bf16.mxu0 0
    %915 = vmatpush1.bf16.msra.mxu0 0
    %916 = vmatprep.mubr.bf16.mxu0 0
    %917 = vmatmul.mubr.bf16.gmra.mrb[0].mxu0 %v873
    %v918 = vpop.f32.mrb[0].mxu0
    %v919 = vadd.f32 0.0, %v918
    %v920 = vpop.f32.mrb[0].mxu0
    %v921 = vpop.f32.mrb[0].mxu0
    %v922 = vadd.f32 0.0, %v921
    %v923 = vpop.f32.mrb[0].mxu0
    %924 = vmatprep.mubr.bf16.mxu0 0
    %925 = vmatmul.mubr.bf16.gmra.mrb[0].mxu0 %v876
    %v926 = vpop.f32.mrb[0].mxu0
    %v927 = vadd.f32 0.0, %v926
    %v928 = vpop.f32.mrb[0].mxu0
    %v929 = vpop.f32.mrb[0].mxu0
    %v930 = vadd.f32 0.0, %v929
    %v931 = vpop.f32.mrb[0].mxu0
    %932 = vmatprep.mubr.bf16.mxu0 0
    %933 = vmatmul.mubr.bf16.gmra.mrb[0].mxu0 %v879
    %v934 = vpop.f32.mrb[0].mxu0
    %v935 = vadd.f32 0.0, %v934
    %v936 = vpop.f32.mrb[0].mxu0
    %v937 = vpop.f32.mrb[0].mxu0
    %v938 = vadd.f32 0.0, %v937
    %v939 = vpop.f32.mrb[0].mxu0
    %940 = vmatprep.mubr.bf16.mxu0 0
    %941 = vmatmul.mubr.bf16.gmra.mrb[0].mxu0 %v882
    %v942 = vpop.f32.mrb[0].mxu0
    %v943 = vadd.f32 0.0, %v942
    %v944 = vpop.f32.mrb[0].mxu0
    %v945 = vpop.f32.mrb[0].mxu0
    %v946 = vadd.f32 0.0, %v945
    %v947 = vpop.f32.mrb[0].mxu0
    %948 = vdwg.mxu0
    %v953 = vunpack.c.l.b16 %v852
    %v954 = vunpack.c.l.b16 %v853
    %v955 = vunpack.c.l.b16 %v854
    %v956 = vunpack.c.l.b16 %v855
    %v957 = vpack.c.b16 %v954, %v953
    %v958 = vpack.c.b16 %v956, %v955
    %v962 = vsel %vm468, %v844, 0
    %v965 = vsel %vm468, %v845, 0
    %v968 = vsel %vm468, %v846, 0
    %v971 = vsel %vm468, %v847, 0
    %973 = vmatprep.subr.bf16.mxu0 0
    %974 = vmatpush1.bf16.msra.mxu0 %v957
    %975 = vmatprep.subr.bf16.mxu0 0
    %976 = vmatpush1.bf16.msra.mxu0 %v958
    %977 = vmatprep.subr.bf16.mxu0 0
    %978 = vmatpush1.bf16.msra.mxu0 0
    %979 = vmatprep.subr.bf16.mxu0 0
    %980 = vmatpush1.bf16.msra.mxu0 0
    %981 = vmatprep.subr.bf16.mxu0 0
    %982 = vmatpush1.bf16.msra.mxu0 0
    %983 = vmatprep.subr.bf16.mxu0 0
    %984 = vmatpush1.bf16.msra.mxu0 0
    %985 = vmatprep.subr.bf16.mxu0 0
    %986 = vmatpush1.bf16.msra.mxu0 0
    %987 = vmatprep.subr.bf16.mxu0 0
    %988 = vmatpush1.bf16.msra.mxu0 0
    %989 = vmatprep.subr.bf16.mxu0 0
    %990 = vmatpush1.bf16.msra.mxu0 0
    %991 = vmatprep.subr.bf16.mxu0 0
    %992 = vmatpush1.bf16.msra.mxu0 0
    %993 = vmatprep.subr.bf16.mxu0 0
    %994 = vmatpush1.bf16.msra.mxu0 0
    %995 = vmatprep.subr.bf16.mxu0 0
    %996 = vmatpush1.bf16.msra.mxu0 0
    %997 = vmatprep.subr.bf16.mxu0 0
    %998 = vmatpush1.bf16.msra.mxu0 0
    %999 = vmatprep.subr.bf16.mxu0 0
    %1000 = vmatpush1.bf16.msra.mxu0 0
    %1001 = vmatprep.subr.bf16.mxu0 0
    %1002 = vmatpush1.bf16.msra.mxu0 0
    %1003 = vmatprep.subr.bf16.mxu0 0
    %1004 = vmatpush1.bf16.msra.mxu0 0
    %1005 = vmatprep.mubr.bf16.mxu0 0
    %1006 = vmatmul.mubr.bf16.gmra.mrb[0].mxu0 %v962
    %v1007 = vpop.f32.mrb[0].mxu0
    %v1008 = vadd.f32 %v919, %v1007
    %v1009 = vpop.f32.mrb[0].mxu0
    %v1010 = vpop.f32.mrb[0].mxu0
    %v1011 = vadd.f32 %v922, %v1010
    %v1012 = vpop.f32.mrb[0].mxu0
    %1013 = vmatprep.mubr.bf16.mxu0 0
    %1014 = vmatmul.mubr.bf16.gmra.mrb[0].mxu0 %v965
    %v1015 = vpop.f32.mrb[0].mxu0
    %v1016 = vadd.f32 %v927, %v1015
    %v1017 = vpop.f32.mrb[0].mxu0
    %v1018 = vpop.f32.mrb[0].mxu0
    %v1019 = vadd.f32 %v930, %v1018
    %v1020 = vpop.f32.mrb[0].mxu0
    %1021 = vmatprep.mubr.bf16.mxu0 0
    %1022 = vmatmul.mubr.bf16.gmra.mrb[0].mxu0 %v968
    %v1023 = vpop.f32.mrb[0].mxu0
    %v1024 = vadd.f32 %v935, %v1023
    %v1025 = vpop.f32.mrb[0].mxu0
    %v1026 = vpop.f32.mrb[0].mxu0
    %v1027 = vadd.f32 %v938, %v1026
    %v1028 = vpop.f32.mrb[0].mxu0
    %1029 = vmatprep.mubr.bf16.mxu0 0
    %1030 = vmatmul.mubr.bf16.gmra.mrb[0].mxu0 %v971
    %v1031 = vpop.f32.mrb[0].mxu0
    %v1032 = vadd.f32 %v943, %v1031
    %v1033 = vpop.f32.mrb[0].mxu0
    %v1034 = vpop.f32.mrb[0].mxu0
    %v1035 = vadd.f32 %v946, %v1034
    %v1036 = vpop.f32.mrb[0].mxu0
    %1037 = vdwg.mxu0
    %v1038 = vpack.c.bf16 %v1011, %v1008
    %v1039 = vpack.c.bf16 %v1019, %v1016
    %v1040 = vpack.c.bf16 %v1027, %v1024
    %v1041 = vpack.c.bf16 %v1035, %v1032
    %v1042 = vld [vmem:[%s23] sm:$0xf]
    %v1043 = vld [vmem:[%s23 + $0x4] sm:$0xf]
    %v1044 = vld [vmem:[%s23 + $0x8] sm:$0xf]
    %v1045 = vld [vmem:[%s23 + $0xc] sm:$0xf]
    %v1046 = vld [vmem:[#allocation14] sm:$0xf]
    %v1047 = vld [vmem:[#allocation14 + $0x4] sm:$0xf]
    %v1048 = vld [vmem:[#allocation14 + $0x8] sm:$0xf]
    %v1049 = vld [vmem:[#allocation14 + $0xc] sm:$0xf]
    %v1054 = vunpack.c.l.b16 %v1046
    %v1055 = vunpack.c.l.b16 %v1047
    %v1056 = vunpack.c.l.b16 %v1048
    %v1057 = vunpack.c.l.b16 %v1049
    %v1058 = vpack.c.b16 %v1055, %v1054
    %v1059 = vpack.c.b16 %v1057, %v1056
    %1062 = vmatprep.subr.bf16.mxu0 0
    %1063 = vmatpush1.bf16.msra.mxu0 %v1058
    %1064 = vmatprep.subr.bf16.mxu0 0
    %1065 = vmatpush1.bf16.msra.mxu0 %v1059
    %1066 = vmatprep.subr.bf16.mxu0 0
    %1067 = vmatpush1.bf16.msra.mxu0 0
    %1068 = vmatprep.subr.bf16.mxu0 0
    %1069 = vmatpush1.bf16.msra.mxu0 0
    %1070 = vmatprep.subr.bf16.mxu0 0
    %1071 = vmatpush1.bf16.msra.mxu0 0
    %1072 = vmatprep.subr.bf16.mxu0 0
    %1073 = vmatpush1.bf16.msra.mxu0 0
    %1074 = vmatprep.subr.bf16.mxu0 0
    %1075 = vmatpush1.bf16.msra.mxu0 0
    %1076 = vmatprep.subr.bf16.mxu0 0
    %1077 = vmatpush1.bf16.msra.mxu0 0
    %1078 = vmatprep.subr.bf16.mxu0 0
    %1079 = vmatpush1.bf16.msra.mxu0 0
    %1080 = vmatprep.subr.bf16.mxu0 0
    %1081 = vmatpush1.bf16.msra.mxu0 0
    %1082 = vmatprep.subr.bf16.mxu0 0
    %1083 = vmatpush1.bf16.msra.mxu0 0
    %1084 = vmatprep.subr.bf16.mxu0 0
    %1085 = vmatpush1.bf16.msra.mxu0 0
    %1086 = vmatprep.subr.bf16.mxu0 0
    %1087 = vmatpush1.bf16.msra.mxu0 0
    %1088 = vmatprep.subr.bf16.mxu0 0
    %1089 = vmatpush1.bf16.msra.mxu0 0
    %1090 = vmatprep.subr.bf16.mxu0 0
    %1091 = vmatpush1.bf16.msra.mxu0 0
    %1092 = vmatprep.subr.bf16.mxu0 0
    %1093 = vmatpush1.bf16.msra.mxu0 0
    %1094 = vmatprep.mubr.bf16.mxu0 0
    %1095 = vmatmul.mubr.bf16.gmra.mrb[0].mxu0 %v873
    %v1096 = vpop.f32.mrb[0].mxu0
    %v1097 = vadd.f32 0.0, %v1096
    %v1098 = vpop.f32.mrb[0].mxu0
    %v1099 = vpop.f32.mrb[0].mxu0
    %v1100 = vadd.f32 0.0, %v1099
    %v1101 = vpop.f32.mrb[0].mxu0
    %1102 = vmatprep.mubr.bf16.mxu0 0
    %1103 = vmatmul.mubr.bf16.gmra.mrb[0].mxu0 %v876
    %v1104 = vpop.f32.mrb[0].mxu0
    %v1105 = vadd.f32 0.0, %v1104
    %v1106 = vpop.f32.mrb[0].mxu0
    %v1107 = vpop.f32.mrb[0].mxu0
    %v1108 = vadd.f32 0.0, %v1107
    %v1109 = vpop.f32.mrb[0].mxu0
    %1110 = vmatprep.mubr.bf16.mxu0 0
    %1111 = vmatmul.mubr.bf16.gmra.mrb[0].mxu0 %v879
    %v1112 = vpop.f32.mrb[0].mxu0
    %v1113 = vadd.f32 0.0, %v1112
    %v1114 = vpop.f32.mrb[0].mxu0
    %v1115 = vpop.f32.mrb[0].mxu0
    %v1116 = vadd.f32 0.0, %v1115
    %v1117 = vpop.f32.mrb[0].mxu0
    %1118 = vmatprep.mubr.bf16.mxu0 0
    %1119 = vmatmul.mubr.bf16.gmra.mrb[0].mxu0 %v882
    %v1120 = vpop.f32.mrb[0].mxu0
    %v1121 = vadd.f32 0.0, %v1120
    %v1122 = vpop.f32.mrb[0].mxu0
    %v1123 = vpop.f32.mrb[0].mxu0
    %v1124 = vadd.f32 0.0, %v1123
    %v1125 = vpop.f32.mrb[0].mxu0
    %1126 = vdwg.mxu0
    %v1131 = vunpack.c.l.b16 %v1042
    %v1132 = vunpack.c.l.b16 %v1043
    %v1133 = vunpack.c.l.b16 %v1044
    %v1134 = vunpack.c.l.b16 %v1045
    %v1135 = vpack.c.b16 %v1132, %v1131
    %v1136 = vpack.c.b16 %v1134, %v1133
    %1139 = vmatprep.subr.bf16.mxu0 0
    %1140 = vmatpush1.bf16.msra.mxu0 %v1135
    %1141 = vmatprep.subr.bf16.mxu0 0
    %1142 = vmatpush1.bf16.msra.mxu0 %v1136
    %1143 = vmatprep.subr.bf16.mxu0 0
    %1144 = vmatpush1.bf16.msra.mxu0 0
    %1145 = vmatprep.subr.bf16.mxu0 0
    %1146 = vmatpush1.bf16.msra.mxu0 0
    %1147 = vmatprep.subr.bf16.mxu0 0
    %1148 = vmatpush1.bf16.msra.mxu0 0
    %1149 = vmatprep.subr.bf16.mxu0 0
    %1150 = vmatpush1.bf16.msra.mxu0 0
    %1151 = vmatprep.subr.bf16.mxu0 0
    %1152 = vmatpush1.bf16.msra.mxu0 0
    %1153 = vmatprep.subr.bf16.mxu0 0
    %1154 = vmatpush1.bf16.msra.mxu0 0
    %1155 = vmatprep.subr.bf16.mxu0 0
    %1156 = vmatpush1.bf16.msra.mxu0 0
    %1157 = vmatprep.subr.bf16.mxu0 0
    %1158 = vmatpush1.bf16.msra.mxu0 0
    %1159 = vmatprep.subr.bf16.mxu0 0
    %1160 = vmatpush1.bf16.msra.mxu0 0
    %1161 = vmatprep.subr.bf16.mxu0 0
    %1162 = vmatpush1.bf16.msra.mxu0 0
    %1163 = vmatprep.subr.bf16.mxu0 0
    %1164 = vmatpush1.bf16.msra.mxu0 0
    %1165 = vmatprep.subr.bf16.mxu0 0
    %1166 = vmatpush1.bf16.msra.mxu0 0
    %1167 = vmatprep.subr.bf16.mxu0 0
    %1168 = vmatpush1.bf16.msra.mxu0 0
    %1169 = vmatprep.subr.bf16.mxu0 0
    %1170 = vmatpush1.bf16.msra.mxu0 0
    %1171 = vmatprep.mubr.bf16.mxu0 0
    %1172 = vmatmul.mubr.bf16.gmra.mrb[0].mxu0 %v962
    %v1173 = vpop.f32.mrb[0].mxu0
    %v1174 = vadd.f32 %v1097, %v1173
    %v1175 = vpop.f32.mrb[0].mxu0
    %v1176 = vpop.f32.mrb[0].mxu0
    %v1177 = vadd.f32 %v1100, %v1176
    %v1178 = vpop.f32.mrb[0].mxu0
    %1179 = vmatprep.mubr.bf16.mxu0 0
    %1180 = vmatmul.mubr.bf16.gmra.mrb[0].mxu0 %v965
    %v1181 = vpop.f32.mrb[0].mxu0
    %v1182 = vadd.f32 %v1105, %v1181
    %v1183 = vpop.f32.mrb[0].mxu0
    %v1184 = vpop.f32.mrb[0].mxu0
    %v1185 = vadd.f32 %v1108, %v1184
    %v1186 = vpop.f32.mrb[0].mxu0
    %1187 = vmatprep.mubr.bf16.mxu0 0
    %1188 = vmatmul.mubr.bf16.gmra.mrb[0].mxu0 %v968
    %v1189 = vpop.f32.mrb[0].mxu0
    %v1190 = vadd.f32 %v1113, %v1189
    %v1191 = vpop.f32.mrb[0].mxu0
    %v1192 = vpop.f32.mrb[0].mxu0
    %v1193 = vadd.f32 %v1116, %v1192
    %v1194 = vpop.f32.mrb[0].mxu0
    %1195 = vmatprep.mubr.bf16.mxu0 0
    %1196 = vmatmul.mubr.bf16.gmra.mrb[0].mxu0 %v971
    %v1197 = vpop.f32.mrb[0].mxu0
    %v1198 = vadd.f32 %v1121, %v1197
    %v1199 = vpop.f32.mrb[0].mxu0
    %v1200 = vpop.f32.mrb[0].mxu0
    %v1201 = vadd.f32 %v1124, %v1200
    %v1202 = vpop.f32.mrb[0].mxu0
    %1203 = vdwg.mxu0
    %v1204 = vpack.c.bf16 %v1177, %v1174
    %v1205 = vpack.c.bf16 %v1185, %v1182
    %v1206 = vpack.c.bf16 %v1193, %v1190
    %v1207 = vpack.c.bf16 %v1201, %v1198
    %v1208 = vld [vmem:[#allocation16] sm:$0x1]
    %v1210 = vlaneseq
    %v1211 = vshrl.u32 %v1210, 7
    %v1212 = vsub.s32 0, %v1211
    %v1213 = vrot.slane %v1208, %v1212
    %1215 = vmatprep.subr.bf16.mxu0 0
    %1216 = vmatpush1.bf16.msra.mxu0 %v1038
    %1217 = vmatprep.subr.bf16.mxu0 0
    %1218 = vmatpush1.bf16.msra.mxu0 %v1039
    %1219 = vmatprep.subr.bf16.mxu0 0
    %1220 = vmatpush1.bf16.msra.mxu0 %v1040
    %1221 = vmatprep.subr.bf16.mxu0 0
    %1222 = vmatpush1.bf16.msra.mxu0 %v1041
    %1223 = vmatprep.subr.bf16.mxu0 0
    %1224 = vmatpush1.bf16.msra.mxu0 0
    %1225 = vmatprep.subr.bf16.mxu0 0
    %1226 = vmatpush1.bf16.msra.mxu0 0
    %1227 = vmatprep.subr.bf16.mxu0 0
    %1228 = vmatpush1.bf16.msra.mxu0 0
    %1229 = vmatprep.subr.bf16.mxu0 0
    %1230 = vmatpush1.bf16.msra.mxu0 0
    %1231 = vmatprep.subr.bf16.mxu0 0
    %1232 = vmatpush1.bf16.msra.mxu0 0
    %1233 = vmatprep.subr.bf16.mxu0 0
    %1234 = vmatpush1.bf16.msra.mxu0 0
    %1235 = vmatprep.subr.bf16.mxu0 0
    %1236 = vmatpush1.bf16.msra.mxu0 0
    %1237 = vmatprep.subr.bf16.mxu0 0
    %1238 = vmatpush1.bf16.msra.mxu0 0
    %1239 = vmatprep.subr.bf16.mxu0 0
    %1240 = vmatpush1.bf16.msra.mxu0 0
    %1241 = vmatprep.subr.bf16.mxu0 0
    %1242 = vmatpush1.bf16.msra.mxu0 0
    %1243 = vmatprep.subr.bf16.mxu0 0
    %1244 = vmatpush1.bf16.msra.mxu0 0
    %1245 = vmatprep.subr.bf16.mxu0 0
    %1246 = vmatpush1.bf16.msra.mxu0 0
    %1247 = vmatprep.mubr.bf16.mxu0 0
    %1248 = vmatmul.mubr.bf16.gmra.mrb[0].mxu0 %v664
    %v1249 = vpop.f32.mrb[0].mxu0
    %v1250 = vadd.f32 %v1213, %v1249
    %v1251 = vpop.f32.mrb[0].mxu0
    %v1252 = vpop.f32.mrb[0].mxu0
    %v1253 = vadd.f32 %v1213, %v1252
    %v1254 = vpop.f32.mrb[0].mxu0
    %1255 = vmatprep.mubr.bf16.mxu0 0
    %1256 = vmatmul.mubr.bf16.gmra.mrb[0].mxu0 %v667
    %v1257 = vpop.f32.mrb[0].mxu0
    %v1258 = vadd.f32 %v1213, %v1257
    %v1259 = vpop.f32.mrb[0].mxu0
    %v1260 = vpop.f32.mrb[0].mxu0
    %v1261 = vadd.f32 %v1213, %v1260
    %v1262 = vpop.f32.mrb[0].mxu0
    %1263 = vmatprep.mubr.bf16.mxu0 0
    %1264 = vmatmul.mubr.bf16.gmra.mrb[0].mxu0 %v670
    %v1265 = vpop.f32.mrb[0].mxu0
    %v1266 = vadd.f32 %v1213, %v1265
    %v1267 = vpop.f32.mrb[0].mxu0
    %v1268 = vpop.f32.mrb[0].mxu0
    %v1269 = vadd.f32 %v1213, %v1268
    %v1270 = vpop.f32.mrb[0].mxu0
    %1271 = vmatprep.mubr.bf16.mxu0 0
    %1272 = vmatmul.mubr.bf16.gmra.mrb[0].mxu0 %v673
    %v1273 = vpop.f32.mrb[0].mxu0
    %v1274 = vadd.f32 %v1213, %v1273
    %v1275 = vpop.f32.mrb[0].mxu0
    %v1276 = vpop.f32.mrb[0].mxu0
    %v1277 = vadd.f32 %v1213, %v1276
    %v1278 = vpop.f32.mrb[0].mxu0
    %1279 = vdwg.mxu0
    %v1280 = vld [vmem:[#allocation17] sm:$0x1]
    %v1282 = vlaneseq
    %v1283 = vshrl.u32 %v1282, 7
    %v1284 = vsub.s32 0, %v1283
    %v1285 = vrot.slane %v1280, %v1284
    %1287 = vmatprep.subr.bf16.mxu0 0
    %1288 = vmatpush1.bf16.msra.mxu0 %v1204
    %1289 = vmatprep.subr.bf16.mxu0 0
    %1290 = vmatpush1.bf16.msra.mxu0 %v1205
    %1291 = vmatprep.subr.bf16.mxu0 0
    %1292 = vmatpush1.bf16.msra.mxu0 %v1206
    %1293 = vmatprep.subr.bf16.mxu0 0
    %1294 = vmatpush1.bf16.msra.mxu0 %v1207
    %1295 = vmatprep.subr.bf16.mxu0 0
    %1296 = vmatpush1.bf16.msra.mxu0 0
    %1297 = vmatprep.subr.bf16.mxu0 0
    %1298 = vmatpush1.bf16.msra.mxu0 0
    %1299 = vmatprep.subr.bf16.mxu0 0
    %1300 = vmatpush1.bf16.msra.mxu0 0
    %1301 = vmatprep.subr.bf16.mxu0 0
    %1302 = vmatpush1.bf16.msra.mxu0 0
    %1303 = vmatprep.subr.bf16.mxu0 0
    %1304 = vmatpush1.bf16.msra.mxu0 0
    %1305 = vmatprep.subr.bf16.mxu0 0
    %1306 = vmatpush1.bf16.msra.mxu0 0
    %1307 = vmatprep.subr.bf16.mxu0 0
    %1308 = vmatpush1.bf16.msra.mxu0 0
    %1309 = vmatprep.subr.bf16.mxu0 0
    %1310 = vmatpush1.bf16.msra.mxu0 0
    %1311 = vmatprep.subr.bf16.mxu0 0
    %1312 = vmatpush1.bf16.msra.mxu0 0
    %1313 = vmatprep.subr.bf16.mxu0 0
    %1314 = vmatpush1.bf16.msra.mxu0 0
    %1315 = vmatprep.subr.bf16.mxu0 0
    %1316 = vmatpush1.bf16.msra.mxu0 0
    %1317 = vmatprep.subr.bf16.mxu0 0
    %1318 = vmatpush1.bf16.msra.mxu0 0
    %1319 = vmatprep.mubr.bf16.mxu0 0
    %1320 = vmatmul.mubr.bf16.gmra.mrb[0].mxu0 %v768
    %v1321 = vpop.f32.mrb[0].mxu0
    %v1322 = vadd.f32 %v1285, %v1321
    %v1323 = vpop.f32.mrb[0].mxu0
    %v1324 = vpop.f32.mrb[0].mxu0
    %v1325 = vadd.f32 %v1285, %v1324
    %v1326 = vpop.f32.mrb[0].mxu0
    %1327 = vmatprep.mubr.bf16.mxu0 0
    %1328 = vmatmul.mubr.bf16.gmra.mrb[0].mxu0 %v771
    %v1329 = vpop.f32.mrb[0].mxu0
    %v1330 = vadd.f32 %v1285, %v1329
    %v1331 = vpop.f32.mrb[0].mxu0
    %v1332 = vpop.f32.mrb[0].mxu0
    %v1333 = vadd.f32 %v1285, %v1332
    %v1334 = vpop.f32.mrb[0].mxu0
    %1335 = vmatprep.mubr.bf16.mxu0 0
    %1336 = vmatmul.mubr.bf16.gmra.mrb[0].mxu0 %v774
    %v1337 = vpop.f32.mrb[0].mxu0
    %v1338 = vadd.f32 %v1285, %v1337
    %v1339 = vpop.f32.mrb[0].mxu0
    %v1340 = vpop.f32.mrb[0].mxu0
    %v1341 = vadd.f32 %v1285, %v1340
    %v1342 = vpop.f32.mrb[0].mxu0
    %1343 = vmatprep.mubr.bf16.mxu0 0
    %1344 = vmatmul.mubr.bf16.gmra.mrb[0].mxu0 %v777
    %v1345 = vpop.f32.mrb[0].mxu0
    %v1346 = vadd.f32 %v1285, %v1345
    %v1347 = vpop.f32.mrb[0].mxu0
    %v1348 = vpop.f32.mrb[0].mxu0
    %v1349 = vadd.f32 %v1285, %v1348
    %v1350 = vpop.f32.mrb[0].mxu0
    %1351 = vdwg.mxu0
    %v1352 = vpack.c.bf16 %v1253, %v1250
    %v1353 = vpack.c.bf16 %v1261, %v1258
    %v1354 = vpack.c.bf16 %v1269, %v1266
    %v1355 = vpack.c.bf16 %v1277, %v1274
    %v1356 = vpack.c.bf16 %v1325, %v1322
    %v1357 = vpack.c.bf16 %v1333, %v1330
    %v1358 = vpack.c.bf16 %v1341, %v1338
    %v1359 = vpack.c.bf16 %v1349, %v1346
    %v1360 = vld [vmem:[%s31] sm:$0xf]
    %v1361 = vld [vmem:[%s31 + $0x4] sm:$0xf]
    %v1362 = vld [vmem:[%s31 + $0x8] sm:$0xf]
    %v1363 = vld [vmem:[%s31 + $0xc] sm:$0xf]
    %v1364 = vld [vmem:[#allocation19] sm:$0xf]
    %v1365 = vld [vmem:[#allocation19 + $0x4] sm:$0xf]
    %v1366 = vld [vmem:[#allocation19 + $0x8] sm:$0xf]
    %v1367 = vld [vmem:[#allocation19 + $0xc] sm:$0xf]
    %v1372 = vunpack.c.l.b16 %v1364
    %v1373 = vunpack.c.l.b16 %v1365
    %v1374 = vunpack.c.l.b16 %v1366
    %v1375 = vunpack.c.l.b16 %v1367
    %v1376 = vpack.c.b16 %v1373, %v1372
    %v1377 = vpack.c.b16 %v1375, %v1374
    %v1381 = vsel %vm468, %v1356, 0
    %v1384 = vsel %vm468, %v1357, 0
    %v1387 = vsel %vm468, %v1358, 0
    %v1390 = vsel %vm468, %v1359, 0
    %1392 = vmatprep.subr.bf16.mxu0 0
    %1393 = vmatpush1.bf16.msra.mxu0 %v1376
    %1394 = vmatprep.subr.bf16.mxu0 0
    %1395 = vmatpush1.bf16.msra.mxu0 %v1377
    %1396 = vmatprep.subr.bf16.mxu0 0
    %1397 = vmatpush1.bf16.msra.mxu0 0
    %1398 = vmatprep.subr.bf16.mxu0 0
    %1399 = vmatpush1.bf16.msra.mxu0 0
    %1400 = vmatprep.subr.bf16.mxu0 0
    %1401 = vmatpush1.bf16.msra.mxu0 0
    %1402 = vmatprep.subr.bf16.mxu0 0
    %1403 = vmatpush1.bf16.msra.mxu0 0
    %1404 = vmatprep.subr.bf16.mxu0 0
    %1405 = vmatpush1.bf16.msra.mxu0 0
    %1406 = vmatprep.subr.bf16.mxu0 0
    %1407 = vmatpush1.bf16.msra.mxu0 0
    %1408 = vmatprep.subr.bf16.mxu0 0
    %1409 = vmatpush1.bf16.msra.mxu0 0
    %1410 = vmatprep.subr.bf16.mxu0 0
    %1411 = vmatpush1.bf16.msra.mxu0 0
    %1412 = vmatprep.subr.bf16.mxu0 0
    %1413 = vmatpush1.bf16.msra.mxu0 0
    %1414 = vmatprep.subr.bf16.mxu0 0
    %1415 = vmatpush1.bf16.msra.mxu0 0
    %1416 = vmatprep.subr.bf16.mxu0 0
    %1417 = vmatpush1.bf16.msra.mxu0 0
    %1418 = vmatprep.subr.bf16.mxu0 0
    %1419 = vmatpush1.bf16.msra.mxu0 0
    %1420 = vmatprep.subr.bf16.mxu0 0
    %1421 = vmatpush1.bf16.msra.mxu0 0
    %1422 = vmatprep.subr.bf16.mxu0 0
    %1423 = vmatpush1.bf16.msra.mxu0 0
    %1424 = vmatprep.mubr.bf16.mxu0 0
    %1425 = vmatmul.mubr.bf16.gmra.mrb[0].mxu0 %v1381
    %v1426 = vpop.f32.mrb[0].mxu0
    %v1427 = vadd.f32 0.0, %v1426
    %v1428 = vpop.f32.mrb[0].mxu0
    %v1429 = vpop.f32.mrb[0].mxu0
    %v1430 = vadd.f32 0.0, %v1429
    %v1431 = vpop.f32.mrb[0].mxu0
    %1432 = vmatprep.mubr.bf16.mxu0 0
    %1433 = vmatmul.mubr.bf16.gmra.mrb[0].mxu0 %v1384
    %v1434 = vpop.f32.mrb[0].mxu0
    %v1435 = vadd.f32 0.0, %v1434
    %v1436 = vpop.f32.mrb[0].mxu0
    %v1437 = vpop.f32.mrb[0].mxu0
    %v1438 = vadd.f32 0.0, %v1437
    %v1439 = vpop.f32.mrb[0].mxu0
    %1440 = vmatprep.mubr.bf16.mxu0 0
    %1441 = vmatmul.mubr.bf16.gmra.mrb[0].mxu0 %v1387
    %v1442 = vpop.f32.mrb[0].mxu0
    %v1443 = vadd.f32 0.0, %v1442
    %v1444 = vpop.f32.mrb[0].mxu0
    %v1445 = vpop.f32.mrb[0].mxu0
    %v1446 = vadd.f32 0.0, %v1445
    %v1447 = vpop.f32.mrb[0].mxu0
    %1448 = vmatprep.mubr.bf16.mxu0 0
    %1449 = vmatmul.mubr.bf16.gmra.mrb[0].mxu0 %v1390
    %v1450 = vpop.f32.mrb[0].mxu0
    %v1451 = vadd.f32 0.0, %v1450
    %v1452 = vpop.f32.mrb[0].mxu0
    %v1453 = vpop.f32.mrb[0].mxu0
    %v1454 = vadd.f32 0.0, %v1453
    %v1455 = vpop.f32.mrb[0].mxu0
    %1456 = vdwg.mxu0
    %v1461 = vunpack.c.l.b16 %v1360
    %v1462 = vunpack.c.l.b16 %v1361
    %v1463 = vunpack.c.l.b16 %v1362
    %v1464 = vunpack.c.l.b16 %v1363
    %v1465 = vpack.c.b16 %v1462, %v1461
    %v1466 = vpack.c.b16 %v1464, %v1463
    %v1470 = vsel %vm468, %v1352, 0
    %v1473 = vsel %vm468, %v1353, 0
    %v1476 = vsel %vm468, %v1354, 0
    %v1479 = vsel %vm468, %v1355, 0
    %1481 = vmatprep.subr.bf16.mxu0 0
    %1482 = vmatpush1.bf16.msra.mxu0 %v1465
    %1483 = vmatprep.subr.bf16.mxu0 0
    %1484 = vmatpush1.bf16.msra.mxu0 %v1466
    %1485 = vmatprep.subr.bf16.mxu0 0
    %1486 = vmatpush1.bf16.msra.mxu0 0
    %1487 = vmatprep.subr.bf16.mxu0 0
    %1488 = vmatpush1.bf16.msra.mxu0 0
    %1489 = vmatprep.subr.bf16.mxu0 0
    %1490 = vmatpush1.bf16.msra.mxu0 0
    %1491 = vmatprep.subr.bf16.mxu0 0
    %1492 = vmatpush1.bf16.msra.mxu0 0
    %1493 = vmatprep.subr.bf16.mxu0 0
    %1494 = vmatpush1.bf16.msra.mxu0 0
    %1495 = vmatprep.subr.bf16.mxu0 0
    %1496 = vmatpush1.bf16.msra.mxu0 0
    %1497 = vmatprep.subr.bf16.mxu0 0
    %1498 = vmatpush1.bf16.msra.mxu0 0
    %1499 = vmatprep.subr.bf16.mxu0 0
    %1500 = vmatpush1.bf16.msra.mxu0 0
    %1501 = vmatprep.subr.bf16.mxu0 0
    %1502 = vmatpush1.bf16.msra.mxu0 0
    %1503 = vmatprep.subr.bf16.mxu0 0
    %1504 = vmatpush1.bf16.msra.mxu0 0
    %1505 = vmatprep.subr.bf16.mxu0 0
    %1506 = vmatpush1.bf16.msra.mxu0 0
    %1507 = vmatprep.subr.bf16.mxu0 0
    %1508 = vmatpush1.bf16.msra.mxu0 0
    %1509 = vmatprep.subr.bf16.mxu0 0
    %1510 = vmatpush1.bf16.msra.mxu0 0
    %1511 = vmatprep.subr.bf16.mxu0 0
    %1512 = vmatpush1.bf16.msra.mxu0 0
    %1513 = vmatprep.mubr.bf16.mxu0 0
    %1514 = vmatmul.mubr.bf16.gmra.mrb[0].mxu0 %v1470
    %v1515 = vpop.f32.mrb[0].mxu0
    %v1516 = vadd.f32 %v1427, %v1515
    %v1517 = vpop.f32.mrb[0].mxu0
    %v1518 = vpop.f32.mrb[0].mxu0
    %v1519 = vadd.f32 %v1430, %v1518
    %v1520 = vpop.f32.mrb[0].mxu0
    %1521 = vmatprep.mubr.bf16.mxu0 0
    %1522 = vmatmul.mubr.bf16.gmra.mrb[0].mxu0 %v1473
    %v1523 = vpop.f32.mrb[0].mxu0
    %v1524 = vadd.f32 %v1435, %v1523
    %v1525 = vpop.f32.mrb[0].mxu0
    %v1526 = vpop.f32.mrb[0].mxu0
    %v1527 = vadd.f32 %v1438, %v1526
    %v1528 = vpop.f32.mrb[0].mxu0
    %1529 = vmatprep.mubr.bf16.mxu0 0
    %1530 = vmatmul.mubr.bf16.gmra.mrb[0].mxu0 %v1476
    %v1531 = vpop.f32.mrb[0].mxu0
    %v1532 = vadd.f32 %v1443, %v1531
    %v1533 = vpop.f32.mrb[0].mxu0
    %v1534 = vpop.f32.mrb[0].mxu0
    %v1535 = vadd.f32 %v1446, %v1534
    %v1536 = vpop.f32.mrb[0].mxu0
    %1537 = vmatprep.mubr.bf16.mxu0 0
    %1538 = vmatmul.mubr.bf16.gmra.mrb[0].mxu0 %v1479
    %v1539 = vpop.f32.mrb[0].mxu0
    %v1540 = vadd.f32 %v1451, %v1539
    %v1541 = vpop.f32.mrb[0].mxu0
    %v1542 = vpop.f32.mrb[0].mxu0
    %v1543 = vadd.f32 %v1454, %v1542
    %v1544 = vpop.f32.mrb[0].mxu0
    %1545 = vdwg.mxu0
    %v1546 = vpack.c.bf16 %v1519, %v1516
    %v1547 = vpack.c.bf16 %v1527, %v1524
    %v1548 = vpack.c.bf16 %v1535, %v1532
    %v1549 = vpack.c.bf16 %v1543, %v1540
    %v1550 = vld [vmem:[#allocation20] sm:$0xf]
    %v1551 = vld [vmem:[#allocation20 + $0x4] sm:$0xf]
    %v1552 = vld [vmem:[#allocation20 + $0x8] sm:$0xf]
    %v1553 = vld [vmem:[#allocation20 + $0xc] sm:$0xf]
    %v1554 = vld [vmem:[#allocation22] sm:$0xf]
    %v1555 = vld [vmem:[#allocation22 + $0x4] sm:$0xf]
    %v1556 = vld [vmem:[#allocation22 + $0x8] sm:$0xf]
    %v1557 = vld [vmem:[#allocation22 + $0xc] sm:$0xf]
    %v1562 = vunpack.c.l.b16 %v1554
    %v1563 = vunpack.c.l.b16 %v1555
    %v1564 = vunpack.c.l.b16 %v1556
    %v1565 = vunpack.c.l.b16 %v1557
    %v1566 = vpack.c.b16 %v1563, %v1562
    %v1567 = vpack.c.b16 %v1565, %v1564
    %1570 = vmatprep.subr.bf16.mxu0 0
    %1571 = vmatpush1.bf16.msra.mxu0 %v1566
    %1572 = vmatprep.subr.bf16.mxu0 0
    %1573 = vmatpush1.bf16.msra.mxu0 %v1567
    %1574 = vmatprep.subr.bf16.mxu0 0
    %1575 = vmatpush1.bf16.msra.mxu0 0
    %1576 = vmatprep.subr.bf16.mxu0 0
    %1577 = vmatpush1.bf16.msra.mxu0 0
    %1578 = vmatprep.subr.bf16.mxu0 0
    %1579 = vmatpush1.bf16.msra.mxu0 0
    %1580 = vmatprep.subr.bf16.mxu0 0
    %1581 = vmatpush1.bf16.msra.mxu0 0
    %1582 = vmatprep.subr.bf16.mxu0 0
    %1583 = vmatpush1.bf16.msra.mxu0 0
    %1584 = vmatprep.subr.bf16.mxu0 0
    %1585 = vmatpush1.bf16.msra.mxu0 0
    %1586 = vmatprep.subr.bf16.mxu0 0
    %1587 = vmatpush1.bf16.msra.mxu0 0
    %1588 = vmatprep.subr.bf16.mxu0 0
    %1589 = vmatpush1.bf16.msra.mxu0 0
    %1590 = vmatprep.subr.bf16.mxu0 0
    %1591 = vmatpush1.bf16.msra.mxu0 0
    %1592 = vmatprep.subr.bf16.mxu0 0
    %1593 = vmatpush1.bf16.msra.mxu0 0
    %1594 = vmatprep.subr.bf16.mxu0 0
    %1595 = vmatpush1.bf16.msra.mxu0 0
    %1596 = vmatprep.subr.bf16.mxu0 0
    %1597 = vmatpush1.bf16.msra.mxu0 0
    %1598 = vmatprep.subr.bf16.mxu0 0
    %1599 = vmatpush1.bf16.msra.mxu0 0
    %1600 = vmatprep.subr.bf16.mxu0 0
    %1601 = vmatpush1.bf16.msra.mxu0 0
    %1602 = vmatprep.mubr.bf16.mxu0 0
    %1603 = vmatmul.mubr.bf16.gmra.mrb[0].mxu0 %v1381
    %v1604 = vpop.f32.mrb[0].mxu0
    %v1605 = vadd.f32 0.0, %v1604
    %v1606 = vpop.f32.mrb[0].mxu0
    %v1607 = vpop.f32.mrb[0].mxu0
    %v1608 = vadd.f32 0.0, %v1607
    %v1609 = vpop.f32.mrb[0].mxu0
    %1610 = vmatprep.mubr.bf16.mxu0 0
    %1611 = vmatmul.mubr.bf16.gmra.mrb[0].mxu0 %v1384
    %v1612 = vpop.f32.mrb[0].mxu0
    %v1613 = vadd.f32 0.0, %v1612
    %v1614 = vpop.f32.mrb[0].mxu0
    %v1615 = vpop.f32.mrb[0].mxu0
    %v1616 = vadd.f32 0.0, %v1615
    %v1617 = vpop.f32.mrb[0].mxu0
    %1618 = vmatprep.mubr.bf16.mxu0 0
    %1619 = vmatmul.mubr.bf16.gmra.mrb[0].mxu0 %v1387
    %v1620 = vpop.f32.mrb[0].mxu0
    %v1621 = vadd.f32 0.0, %v1620
    %v1622 = vpop.f32.mrb[0].mxu0
    %v1623 = vpop.f32.mrb[0].mxu0
    %v1624 = vadd.f32 0.0, %v1623
    %v1625 = vpop.f32.mrb[0].mxu0
    %1626 = vmatprep.mubr.bf16.mxu0 0
    %1627 = vmatmul.mubr.bf16.gmra.mrb[0].mxu0 %v1390
    %v1628 = vpop.f32.mrb[0].mxu0
    %v1629 = vadd.f32 0.0, %v1628
    %v1630 = vpop.f32.mrb[0].mxu0
    %v1631 = vpop.f32.mrb[0].mxu0
    %v1632 = vadd.f32 0.0, %v1631
    %v1633 = vpop.f32.mrb[0].mxu0
    %1634 = vdwg.mxu0
    %v1639 = vunpack.c.l.b16 %v1550
    %v1640 = vunpack.c.l.b16 %v1551
    %v1641 = vunpack.c.l.b16 %v1552
    %v1642 = vunpack.c.l.b16 %v1553
    %v1643 = vpack.c.b16 %v1640, %v1639
    %v1644 = vpack.c.b16 %v1642, %v1641
    %1647 = vmatprep.subr.bf16.mxu0 0
    %1648 = vmatpush1.bf16.msra.mxu0 %v1643
    %1649 = vmatprep.subr.bf16.mxu0 0
    %1650 = vmatpush1.bf16.msra.mxu0 %v1644
    %1651 = vmatprep.subr.bf16.mxu0 0
    %1652 = vmatpush1.bf16.msra.mxu0 0
    %1653 = vmatprep.subr.bf16.mxu0 0
    %1654 = vmatpush1.bf16.msra.mxu0 0
    %1655 = vmatprep.subr.bf16.mxu0 0
    %1656 = vmatpush1.bf16.msra.mxu0 0
    %1657 = vmatprep.subr.bf16.mxu0 0
    %1658 = vmatpush1.bf16.msra.mxu0 0
    %1659 = vmatprep.subr.bf16.mxu0 0
    %1660 = vmatpush1.bf16.msra.mxu0 0
    %1661 = vmatprep.subr.bf16.mxu0 0
    %1662 = vmatpush1.bf16.msra.mxu0 0
    %1663 = vmatprep.subr.bf16.mxu0 0
    %1664 = vmatpush1.bf16.msra.mxu0 0
    %1665 = vmatprep.subr.bf16.mxu0 0
    %1666 = vmatpush1.bf16.msra.mxu0 0
    %1667 = vmatprep.subr.bf16.mxu0 0
    %1668 = vmatpush1.bf16.msra.mxu0 0
    %1669 = vmatprep.subr.bf16.mxu0 0
    %1670 = vmatpush1.bf16.msra.mxu0 0
    %1671 = vmatprep.subr.bf16.mxu0 0
    %1672 = vmatpush1.bf16.msra.mxu0 0
    %1673 = vmatprep.subr.bf16.mxu0 0
    %1674 = vmatpush1.bf16.msra.mxu0 0
    %1675 = vmatprep.subr.bf16.mxu0 0
    %1676 = vmatpush1.bf16.msra.mxu0 0
    %1677 = vmatprep.subr.bf16.mxu0 0
    %1678 = vmatpush1.bf16.msra.mxu0 0
    %1679 = vmatprep.mubr.bf16.mxu0 0
    %1680 = vmatmul.mubr.bf16.gmra.mrb[0].mxu0 %v1470
    %v1681 = vpop.f32.mrb[0].mxu0
    %v1682 = vadd.f32 %v1605, %v1681
    %v1683 = vpop.f32.mrb[0].mxu0
    %v1684 = vpop.f32.mrb[0].mxu0
    %v1685 = vadd.f32 %v1608, %v1684
    %v1686 = vpop.f32.mrb[0].mxu0
    %1687 = vmatprep.mubr.bf16.mxu0 0
    %1688 = vmatmul.mubr.bf16.gmra.mrb[0].mxu0 %v1473
    %v1689 = vpop.f32.mrb[0].mxu0
    %v1690 = vadd.f32 %v1613, %v1689
    %v1691 = vpop.f32.mrb[0].mxu0
    %v1692 = vpop.f32.mrb[0].mxu0
    %v1693 = vadd.f32 %v1616, %v1692
    %v1694 = vpop.f32.mrb[0].mxu0
    %1695 = vmatprep.mubr.bf16.mxu0 0
    %1696 = vmatmul.mubr.bf16.gmra.mrb[0].mxu0 %v1476
    %v1697 = vpop.f32.mrb[0].mxu0
    %v1698 = vadd.f32 %v1621, %v1697
    %v1699 = vpop.f32.mrb[0].mxu0
    %v1700 = vpop.f32.mrb[0].mxu0
    %v1701 = vadd.f32 %v1624, %v1700
    %v1702 = vpop.f32.mrb[0].mxu0
    %1703 = vmatprep.mubr.bf16.mxu0 0
    %1704 = vmatmul.mubr.bf16.gmra.mrb[0].mxu0 %v1479
    %v1705 = vpop.f32.mrb[0].mxu0
    %v1706 = vadd.f32 %v1629, %v1705
    %v1707 = vpop.f32.mrb[0].mxu0
    %v1708 = vpop.f32.mrb[0].mxu0
    %v1709 = vadd.f32 %v1632, %v1708
    %v1710 = vpop.f32.mrb[0].mxu0
    %1711 = vdwg.mxu0
    %v1712 = vpack.c.bf16 %v1685, %v1682
    %v1713 = vpack.c.bf16 %v1693, %v1690
    %v1714 = vpack.c.bf16 %v1701, %v1698
    %v1715 = vpack.c.bf16 %v1709, %v1706
    %v1716 = vld [vmem:[#allocation23] sm:$0x1]
    %v1718 = vlaneseq
    %v1719 = vshrl.u32 %v1718, 7
    %v1720 = vsub.s32 0, %v1719
    %v1721 = vrot.slane %v1716, %v1720
    %1723 = vmatprep.subr.bf16.mxu0 0
    %1724 = vmatpush1.bf16.msra.mxu0 %v1546
    %1725 = vmatprep.subr.bf16.mxu0 0
    %1726 = vmatpush1.bf16.msra.mxu0 %v1547
    %1727 = vmatprep.subr.bf16.mxu0 0
    %1728 = vmatpush1.bf16.msra.mxu0 %v1548
    %1729 = vmatprep.subr.bf16.mxu0 0
    %1730 = vmatpush1.bf16.msra.mxu0 %v1549
    %1731 = vmatprep.subr.bf16.mxu0 0
    %1732 = vmatpush1.bf16.msra.mxu0 0
    %1733 = vmatprep.subr.bf16.mxu0 0
    %1734 = vmatpush1.bf16.msra.mxu0 0
    %1735 = vmatprep.subr.bf16.mxu0 0
    %1736 = vmatpush1.bf16.msra.mxu0 0
    %1737 = vmatprep.subr.bf16.mxu0 0
    %1738 = vmatpush1.bf16.msra.mxu0 0
    %1739 = vmatprep.subr.bf16.mxu0 0
    %1740 = vmatpush1.bf16.msra.mxu0 0
    %1741 = vmatprep.subr.bf16.mxu0 0
    %1742 = vmatpush1.bf16.msra.mxu0 0
    %1743 = vmatprep.subr.bf16.mxu0 0
    %1744 = vmatpush1.bf16.msra.mxu0 0
    %1745 = vmatprep.subr.bf16.mxu0 0
    %1746 = vmatpush1.bf16.msra.mxu0 0
    %1747 = vmatprep.subr.bf16.mxu0 0
    %1748 = vmatpush1.bf16.msra.mxu0 0
    %1749 = vmatprep.subr.bf16.mxu0 0
    %1750 = vmatpush1.bf16.msra.mxu0 0
    %1751 = vmatprep.subr.bf16.mxu0 0
    %1752 = vmatpush1.bf16.msra.mxu0 0
    %1753 = vmatprep.subr.bf16.mxu0 0
    %1754 = vmatpush1.bf16.msra.mxu0 0
    %1755 = vmatprep.mubr.bf16.mxu0 0
    %1756 = vmatmul.mubr.bf16.gmra.mrb[0].mxu0 %v664
    %v1757 = vpop.f32.mrb[0].mxu0
    %v1758 = vadd.f32 %v1721, %v1757
    %v1759 = vpop.f32.mrb[0].mxu0
    %v1760 = vpop.f32.mrb[0].mxu0
    %v1761 = vadd.f32 %v1721, %v1760
    %v1762 = vpop.f32.mrb[0].mxu0
    %1763 = vmatprep.mubr.bf16.mxu0 0
    %1764 = vmatmul.mubr.bf16.gmra.mrb[0].mxu0 %v667
    %v1765 = vpop.f32.mrb[0].mxu0
    %v1766 = vadd.f32 %v1721, %v1765
    %v1767 = vpop.f32.mrb[0].mxu0
    %v1768 = vpop.f32.mrb[0].mxu0
    %v1769 = vadd.f32 %v1721, %v1768
    %v1770 = vpop.f32.mrb[0].mxu0
    %1771 = vmatprep.mubr.bf16.mxu0 0
    %1772 = vmatmul.mubr.bf16.gmra.mrb[0].mxu0 %v670
    %v1773 = vpop.f32.mrb[0].mxu0
    %v1774 = vadd.f32 %v1721, %v1773
    %v1775 = vpop.f32.mrb[0].mxu0
    %v1776 = vpop.f32.mrb[0].mxu0
    %v1777 = vadd.f32 %v1721, %v1776
    %v1778 = vpop.f32.mrb[0].mxu0
    %1779 = vmatprep.mubr.bf16.mxu0 0
    %1780 = vmatmul.mubr.bf16.gmra.mrb[0].mxu0 %v673
    %v1781 = vpop.f32.mrb[0].mxu0
    %v1782 = vadd.f32 %v1721, %v1781
    %v1783 = vpop.f32.mrb[0].mxu0
    %v1784 = vpop.f32.mrb[0].mxu0
    %v1785 = vadd.f32 %v1721, %v1784
    %v1786 = vpop.f32.mrb[0].mxu0
    %1787 = vdwg.mxu0
    %v1788 = vld [vmem:[%s41] sm:$0x1]
    %v1790 = vlaneseq
    %v1791 = vshrl.u32 %v1790, 7
    %v1792 = vsub.s32 0, %v1791
    %v1793 = vrot.slane %v1788, %v1792
    %1795 = vmatprep.subr.bf16.mxu0 0
    %1796 = vmatpush1.bf16.msra.mxu0 %v1712
    %1797 = vmatprep.subr.bf16.mxu0 0
    %1798 = vmatpush1.bf16.msra.mxu0 %v1713
    %1799 = vmatprep.subr.bf16.mxu0 0
    %1800 = vmatpush1.bf16.msra.mxu0 %v1714
    %1801 = vmatprep.subr.bf16.mxu0 0
    %1802 = vmatpush1.bf16.msra.mxu0 %v1715
    %1803 = vmatprep.subr.bf16.mxu0 0
    %1804 = vmatpush1.bf16.msra.mxu0 0
    %1805 = vmatprep.subr.bf16.mxu0 0
    %1806 = vmatpush1.bf16.msra.mxu0 0
    %1807 = vmatprep.subr.bf16.mxu0 0
    %1808 = vmatpush1.bf16.msra.mxu0 0
    %1809 = vmatprep.subr.bf16.mxu0 0
    %1810 = vmatpush1.bf16.msra.mxu0 0
    %1811 = vmatprep.subr.bf16.mxu0 0
    %1812 = vmatpush1.bf16.msra.mxu0 0
    %1813 = vmatprep.subr.bf16.mxu0 0
    %1814 = vmatpush1.bf16.msra.mxu0 0
    %1815 = vmatprep.subr.bf16.mxu0 0
    %1816 = vmatpush1.bf16.msra.mxu0 0
    %1817 = vmatprep.subr.bf16.mxu0 0
    %1818 = vmatpush1.bf16.msra.mxu0 0
    %1819 = vmatprep.subr.bf16.mxu0 0
    %1820 = vmatpush1.bf16.msra.mxu0 0
    %1821 = vmatprep.subr.bf16.mxu0 0
    %1822 = vmatpush1.bf16.msra.mxu0 0
    %1823 = vmatprep.subr.bf16.mxu0 0
    %1824 = vmatpush1.bf16.msra.mxu0 0
    %1825 = vmatprep.subr.bf16.mxu0 0
    %1826 = vmatpush1.bf16.msra.mxu0 0
    %1827 = vmatprep.mubr.bf16.mxu0 0
    %1828 = vmatmul.mubr.bf16.gmra.mrb[0].mxu0 %v768
    %v1829 = vpop.f32.mrb[0].mxu0
    %v1830 = vadd.f32 %v1793, %v1829
    %v1831 = vpop.f32.mrb[0].mxu0
    %v1832 = vpop.f32.mrb[0].mxu0
    %v1833 = vadd.f32 %v1793, %v1832
    %v1834 = vpop.f32.mrb[0].mxu0
    %1835 = vmatprep.mubr.bf16.mxu0 0
    %1836 = vmatmul.mubr.bf16.gmra.mrb[0].mxu0 %v771
    %v1837 = vpop.f32.mrb[0].mxu0
    %v1838 = vadd.f32 %v1793, %v1837
    %v1839 = vpop.f32.mrb[0].mxu0
    %v1840 = vpop.f32.mrb[0].mxu0
    %v1841 = vadd.f32 %v1793, %v1840
    %v1842 = vpop.f32.mrb[0].mxu0
    %1843 = vmatprep.mubr.bf16.mxu0 0
    %1844 = vmatmul.mubr.bf16.gmra.mrb[0].mxu0 %v774
    %v1845 = vpop.f32.mrb[0].mxu0
    %v1846 = vadd.f32 %v1793, %v1845
    %v1847 = vpop.f32.mrb[0].mxu0
    %v1848 = vpop.f32.mrb[0].mxu0
    %v1849 = vadd.f32 %v1793, %v1848
    %v1850 = vpop.f32.mrb[0].mxu0
    %1851 = vmatprep.mubr.bf16.mxu0 0
    %1852 = vmatmul.mubr.bf16.gmra.mrb[0].mxu0 %v777
    %v1853 = vpop.f32.mrb[0].mxu0
    %v1854 = vadd.f32 %v1793, %v1853
    %v1855 = vpop.f32.mrb[0].mxu0
    %v1856 = vpop.f32.mrb[0].mxu0
    %v1857 = vadd.f32 %v1793, %v1856
    %v1858 = vpop.f32.mrb[0].mxu0
    %1859 = vdwg.mxu0
    %v1860 = vld [vmem:[%s43] sm:$0x1]
    %v1862 = vlaneseq
    %v1863 = vshrl.u32 %v1862, 7
    %v1864 = vsub.s32 0, %v1863
    %v1865 = vrot.slane %v1860, %v1864
    %v1867 = vmul.f32 %v440, %v1865
    %v1868 = vmul.f32 %v441, %v1865
    %v1869 = vmul.f32 %v442, %v1865
    %v1870 = vmul.f32 %v443, %v1865
    %v1871 = vmul.f32 %v444, %v1865
    %v1872 = vmul.f32 %v445, %v1865
    %v1873 = vmul.f32 %v446, %v1865
    %v1874 = vmul.f32 %v447, %v1865
    %v1875 = vld [vmem:[%s45] sm:$0x1]
    %v1877 = vlaneseq
    %v1878 = vshrl.u32 %v1877, 7
    %v1879 = vsub.s32 0, %v1878
    %v1880 = vrot.slane %v1875, %v1879
    %v1882 = vmul.f32 %v710, %v1880
    %v1883 = vmul.f32 %v713, %v1880
    %v1884 = vmul.f32 %v718, %v1880
    %v1885 = vmul.f32 %v721, %v1880
    %v1886 = vmul.f32 %v726, %v1880
    %v1887 = vmul.f32 %v729, %v1880
    %v1888 = vmul.f32 %v734, %v1880
    %v1889 = vmul.f32 %v737, %v1880
    %v1890 = vadd.f32 %v1867, %v1882
    %v1891 = vadd.f32 %v1868, %v1883
    %v1892 = vadd.f32 %v1869, %v1884
    %v1893 = vadd.f32 %v1870, %v1885
    %v1894 = vadd.f32 %v1871, %v1886
    %v1895 = vadd.f32 %v1872, %v1887
    %v1896 = vadd.f32 %v1873, %v1888
    %v1897 = vadd.f32 %v1874, %v1889
    %v1898 = vld [vmem:[%s47] sm:$0x1]
    %v1900 = vlaneseq
    %v1901 = vshrl.u32 %v1900, 7
    %v1902 = vsub.s32 0, %v1901
    %v1903 = vrot.slane %v1898, %v1902
    %v1905 = vmul.f32 %v814, %v1903
    %v1906 = vmul.f32 %v817, %v1903
    %v1907 = vmul.f32 %v822, %v1903
    %v1908 = vmul.f32 %v825, %v1903
    %v1909 = vmul.f32 %v830, %v1903
    %v1910 = vmul.f32 %v833, %v1903
    %v1911 = vmul.f32 %v838, %v1903
    %v1912 = vmul.f32 %v841, %v1903
    %v1913 = vadd.f32 %v1890, %v1905
    %v1914 = vadd.f32 %v1891, %v1906
    %v1915 = vadd.f32 %v1892, %v1907
    %v1916 = vadd.f32 %v1893, %v1908
    %v1917 = vadd.f32 %v1894, %v1909
    %v1918 = vadd.f32 %v1895, %v1910
    %v1919 = vadd.f32 %v1896, %v1911
    %v1920 = vadd.f32 %v1897, %v1912
    %v1921 = vld [vmem:[%s49] sm:$0x1]
    %v1923 = vlaneseq
    %v1924 = vshrl.u32 %v1923, 7
    %v1925 = vsub.s32 0, %v1924
    %v1926 = vrot.slane %v1921, %v1925
    %v1928 = vmul.f32 %v1250, %v1926
    %v1929 = vmul.f32 %v1253, %v1926
    %v1930 = vmul.f32 %v1258, %v1926
    %v1931 = vmul.f32 %v1261, %v1926
    %v1932 = vmul.f32 %v1266, %v1926
    %v1933 = vmul.f32 %v1269, %v1926
    %v1934 = vmul.f32 %v1274, %v1926
    %v1935 = vmul.f32 %v1277, %v1926
    %v1936 = vadd.f32 %v1913, %v1928
    %v1937 = vadd.f32 %v1914, %v1929
    %v1938 = vadd.f32 %v1915, %v1930
    %v1939 = vadd.f32 %v1916, %v1931
    %v1940 = vadd.f32 %v1917, %v1932
    %v1941 = vadd.f32 %v1918, %v1933
    %v1942 = vadd.f32 %v1919, %v1934
    %v1943 = vadd.f32 %v1920, %v1935
    %v1944 = vld [vmem:[%s51] sm:$0x1]
    %v1946 = vlaneseq
    %v1947 = vshrl.u32 %v1946, 7
    %v1948 = vsub.s32 0, %v1947
    %v1949 = vrot.slane %v1944, %v1948
    %v1951 = vmul.f32 %v1322, %v1949
    %v1952 = vmul.f32 %v1325, %v1949
    %v1953 = vmul.f32 %v1330, %v1949
    %v1954 = vmul.f32 %v1333, %v1949
    %v1955 = vmul.f32 %v1338, %v1949
    %v1956 = vmul.f32 %v1341, %v1949
    %v1957 = vmul.f32 %v1346, %v1949
    %v1958 = vmul.f32 %v1349, %v1949
    %v1959 = vadd.f32 %v1936, %v1951
    %v1960 = vadd.f32 %v1937, %v1952
    %v1961 = vadd.f32 %v1938, %v1953
    %v1962 = vadd.f32 %v1939, %v1954
    %v1963 = vadd.f32 %v1940, %v1955
    %v1964 = vadd.f32 %v1941, %v1956
    %v1965 = vadd.f32 %v1942, %v1957
    %v1966 = vadd.f32 %v1943, %v1958
    %v1967 = vld [vmem:[%s53] sm:$0x1]
    %v1969 = vlaneseq
    %v1970 = vshrl.u32 %v1969, 7
    %v1971 = vsub.s32 0, %v1970
    %v1972 = vrot.slane %v1967, %v1971
    %v1974 = vmul.f32 %v1758, %v1972
    %v1975 = vmul.f32 %v1761, %v1972
    %v1976 = vmul.f32 %v1766, %v1972
    %v1977 = vmul.f32 %v1769, %v1972
    %v1978 = vmul.f32 %v1774, %v1972
    %v1979 = vmul.f32 %v1777, %v1972
    %v1980 = vmul.f32 %v1782, %v1972
    %v1981 = vmul.f32 %v1785, %v1972
    %v1982 = vadd.f32 %v1959, %v1974
    %v1983 = vadd.f32 %v1960, %v1975
    %v1984 = vadd.f32 %v1961, %v1976
    %v1985 = vadd.f32 %v1962, %v1977
    %v1986 = vadd.f32 %v1963, %v1978
    %v1987 = vadd.f32 %v1964, %v1979
    %v1988 = vadd.f32 %v1965, %v1980
    %v1989 = vadd.f32 %v1966, %v1981
    %v1990 = vld [vmem:[%s55] sm:$0x1]
    %v1992 = vlaneseq
    %v1993 = vshrl.u32 %v1992, 7
    %v1994 = vsub.s32 0, %v1993
    %v1995 = vrot.slane %v1990, %v1994
    %v1997 = vmul.f32 %v1830, %v1995
    %v1998 = vmul.f32 %v1833, %v1995
    %v1999 = vmul.f32 %v1838, %v1995
    %v2000 = vmul.f32 %v1841, %v1995
    %v2001 = vmul.f32 %v1846, %v1995
    %v2002 = vmul.f32 %v1849, %v1995
    %v2003 = vmul.f32 %v1854, %v1995
    %v2004 = vmul.f32 %v1857, %v1995
    %v2005 = vadd.f32 %v1982, %v1997
    %v2006 = vadd.f32 %v1983, %v1998
    %v2007 = vadd.f32 %v1984, %v1999
    %v2008 = vadd.f32 %v1985, %v2000
    %v2009 = vadd.f32 %v1986, %v2001
    %v2010 = vadd.f32 %v1987, %v2002
    %v2011 = vadd.f32 %v1988, %v2003
    %v2012 = vadd.f32 %v1989, %v2004
    %v2013 = vsel %vm468, %v2005, 0.0
    %2014 = vadd.xlane.f32.xlu0 %v2013
    %v2015 = vpop.xlane.xlu0 %2014
    %v2016 = vsel %vm468, %v2006, 0.0
    %2017 = vadd.xlane.f32.xlu0 %v2016
    %v2018 = vpop.xlane.xlu0 %2017
    %v2019 = vsel %vm468, %v2007, 0.0
    %2020 = vadd.xlane.f32.xlu0 %v2019
    %v2021 = vpop.xlane.xlu0 %2020
    %v2022 = vsel %vm468, %v2008, 0.0
    %2023 = vadd.xlane.f32.xlu0 %v2022
    %v2024 = vpop.xlane.xlu0 %2023
    %v2025 = vsel %vm468, %v2009, 0.0
    %2026 = vadd.xlane.f32.xlu0 %v2025
    %v2027 = vpop.xlane.xlu0 %2026
    %v2028 = vsel %vm468, %v2010, 0.0
    %2029 = vadd.xlane.f32.xlu0 %v2028
    %v2030 = vpop.xlane.xlu0 %2029
    %v2031 = vsel %vm468, %v2011, 0.0
    %2032 = vadd.xlane.f32.xlu0 %v2031
    %v2033 = vpop.xlane.xlu0 %2032
    %v2034 = vsel %vm468, %v2012, 0.0
    %2035 = vadd.xlane.f32.xlu0 %v2034
    %v2036 = vpop.xlane.xlu0 %2035
    %v2037 = vld [vmem:[#allocation2] sm:$0x1]
    %v2039 = vlaneseq
    %v2040 = vshrl.u32 %v2039, 7
    %v2041 = vsub.s32 0, %v2040
    %v2042 = vrot.slane %v2037, %v2041
    %v2044 = vadd.f32 %v2015, %v2042
    %v2045 = vadd.f32 %v2018, %v2042
    %v2046 = vadd.f32 %v2021, %v2042
    %v2047 = vadd.f32 %v2024, %v2042
    %v2048 = vadd.f32 %v2027, %v2042
    %v2049 = vadd.f32 %v2030, %v2042
    %v2050 = vadd.f32 %v2033, %v2042
    %v2051 = vadd.f32 %v2036, %v2042
    %vm2052 = vcmask 7168
    %2053 = vst.msk [vmem:[%s59] sm:$0xff] %vm2052, %v2044
    %2054 = vst.msk [vmem:[%s59 + $0x8] sm:$0xff] %vm2052, %v2045
    %2055 = vst.msk [vmem:[%s59 + $0x10] sm:$0xff] %vm2052, %v2046
    %2056 = vst.msk [vmem:[%s59 + $0x18] sm:$0xff] %vm2052, %v2047
    %2057 = vst.msk [vmem:[%s59 + $0x20] sm:$0xff] %vm2052, %v2048
    %2058 = vst.msk [vmem:[%s59 + $0x28] sm:$0xff] %vm2052, %v2049
    %2059 = vst.msk [vmem:[%s59 + $0x30] sm:$0xff] %vm2052, %v2050
    %2060 = vst.msk [vmem:[%s59 + $0x38] sm:$0xff] %vm2052, %v2051
    // Predicated region
    $region174: #{hgdc_c_forward.1} parent=1 // pred_check
      _
    $region175: #{hgdc_c_forward.1} parent=1 // pred_check_branch
      %2062 = sbr.rel (0) target = $region177
    $region176: #{hgdc_c_forward.1} parent=1 // pred_region
      _
    $region177: #{hgdc_c_forward.1} parent=1 // pred_fallthru
      _
    // Predicated region
    $region178: #{hgdc_c_forward.1} parent=1 // pred_check
      _
    $region179: #{hgdc_c_forward.1} parent=1 // pred_check_branch
      %2064 = sbr.rel (0) target = $region181
    $region180: #{hgdc_c_forward.1} parent=1 // pred_region
      _
    $region181: #{hgdc_c_forward.1} parent=1 // pred_fallthru
      _
    %2065 = vsyncpa [#allocation4], 1
    %2066 = vsyncpa [#allocation6], 1
    %2067 = vsyncpa [#allocation9], 1
    %2068 = vsyncpa [#allocation12], 1
    %2069 = vsyncpa [#allocation15], 1
    %2070 = vsyncpa [#allocation18], 1
    %2071 = vsyncpa [#allocation21], 1
    %2072 = vsyncpa [#allocation24], 1

</llo_original>
